<compile_context>
chip_gen: v7x
topology: tpu7x:2x2x1
jax: 0.10.0
libtpu: 0.0.40
codegen_flags: <defaults>
</compile_context>

<pallas_src>
import jax
import jax.numpy as jnp
from jax import lax
from jax.experimental import pallas as pl
from jax.experimental.pallas import tpu as pltpu

EPS = 1e-5  # nn.LayerNorm default


def _patch_unembed_kernel(x_ref, w_ref, sdn_ref, sup_ref, g_ref, b_ref, o_ref):
    # x_ref:   (1, th, W, dim)            input tokens for `th` image rows
    # w_ref:   (dim, 16*final_dim) bf16   transposed Linear weight
    # sdn_ref: (fc, 8)  bf16              block-diagonal 1/final_dim (segment mean; 4 real groups)
    # sup_ref: (8, fc)  bf16              block-diagonal 1.0         (segment broadcast)
    # g_ref:   (1, fc)  f32               LayerNorm gamma tiled 4x
    # b_ref:   (1, fc)  f32               LayerNorm beta  tiled 4x
    # o_ref:   (1, th, 4, W, fc)          fc = 4 * final_dim
    _, th, w_tok, dim = x_ref.shape
    fc = o_ref.shape[-1]
    m = th * w_tok

    xt = x_ref[...].reshape(m, dim).astype(jnp.bfloat16)   # MXU operand
    sdn = sdn_ref[...]
    sup = sup_ref[...]
    g = g_ref[...]
    b = b_ref[...]

    # One p1-chunk (= 4 whole LayerNorm groups, fc lanes) at a time: the chunk is
    # exactly the store unit, and lane slices at multiples of fc stay aligned.
    for p1 in range(4):
        # ---- expand: (m, dim) @ (dim, fc), bf16 operands / f32 accumulation
        y = jnp.dot(xt, w_ref[:, p1 * fc:(p1 + 1) * fc],
                    preferred_element_type=jnp.float32)               # (m, fc) f32

        # ---- LayerNorm over each final_dim-wide group of the fc axis.
        # Segment mean / broadcast via tiny block-diagonal bf16 matmuls (MXU),
        # keeping every elementwise op lane-dense f32 on the (m, fc) slab.
        seg_mean = jnp.dot(y.astype(jnp.bfloat16), sdn,
                           preferred_element_type=jnp.float32)        # (m, 8)
        mean = jnp.dot(seg_mean.astype(jnp.bfloat16), sup,
                       preferred_element_type=jnp.float32)            # (m, fc)
        cen = y - mean
        seg_var = jnp.dot((cen * cen).astype(jnp.bfloat16), sdn,
                          preferred_element_type=jnp.float32)         # (m, 8)
        rstd = lax.rsqrt(seg_var + EPS)                               # (m, 8) EUP
        rstd_b = jnp.dot(rstd.astype(jnp.bfloat16), sup,
                         preferred_element_type=jnp.float32)          # (m, fc)
        normed = cen * rstd_b * g + b                                 # (m, fc) f32

        # ---- fused rearrange 'b h w (p1 p2 c) -> b (h p1) (w p2) c':
        # p1 is its own output axis; (p2, c) stays packed as the lane-dense last
        # dim of width fc (fc % 128 == 0 whenever final_dim % 32 == 0).
        o_ref[0, :, p1, :, :] = normed.reshape(th, w_tok, fc).astype(o_ref.dtype)


def patch_unembed_pallas(x, w_expand, gamma, beta, input_resolution, *,
                         row_tile=None, target_rows=512, out_dtype=None):
    """x: (B, H*W, dim).  w_expand: (16*final_dim, dim) PyTorch Linear layout.
    gamma/beta: (final_dim,) LayerNorm affine params.
    Returns (B, final_dim, 4H, 4W), matching PatchUnembed.forward."""
    H, W = input_resolution
    B, L, dim = x.shape
    assert L == H * W, "input feature has wrong size"
    C = w_expand.shape[0]
    c = gamma.shape[0]                   # final_dim
    assert C == 16 * c, "expand weight / final_dim mismatch"
    fc = 4 * c
    out_dtype = x.dtype if out_dtype is None else out_dtype

    # Rows-of-tokens per grid step: largest divisor of H with th*W <= target_rows
    # (bigger tiles amortize per-step overhead; can be raised to ~1024 on the
    # 128 MiB-VMEM v5e/v6e parts, keep ~512 for the 64 MiB v7x).
    if row_tile is None:
        row_tile = 1
        for t in range(1, H + 1):
            if H % t == 0 and t * W <= target_rows:
                row_tile = t
        # v7x has 2 TensorCores: keep at least 2 grid steps so both get work.
        if B * (H // row_tile) < 2:
            for t in range(row_tile, 0, -1):
                if H % t == 0 and H // t >= 2:
                    row_tile = t
                    break
    th = row_tile
    assert H % th == 0, "row_tile must divide H"
    n_h = H // th

    x4 = x.reshape(B, H, W, dim)
    wt = jnp.transpose(w_expand).astype(jnp.bfloat16)                 # (dim, C)

    # Block-diagonal segment matrices for the per-chunk LayerNorm reductions.
    # 4 real groups of width c, padded to 8 for sublane alignment (pad columns /
    # rows are all-zero, so they contribute nothing to the broadcasts).
    grp = jnp.arange(fc, dtype=jnp.int32) // c                        # values 0..3
    onehot = (grp[:, None] == jnp.arange(8, dtype=jnp.int32)[None, :]
              ).astype(jnp.float32)                                   # (fc, 8)
    sdn = (onehot / jnp.float32(c)).astype(jnp.bfloat16)              # 1/c exact in bf16 for pow2 c
    sup = jnp.transpose(onehot).astype(jnp.bfloat16)                  # (8, fc), 1.0 exact

    g = jnp.tile(gamma.astype(jnp.float32), 4).reshape(1, fc)
    b = jnp.tile(beta.astype(jnp.float32), 4).reshape(1, fc)

    out = pl.pallas_call(
        _patch_unembed_kernel,
        out_shape=jax.ShapeDtypeStruct((B, H, 4, W, fc), out_dtype),
        grid_spec=pltpu.PrefetchScalarGridSpec(
            num_scalar_prefetch=0,
            grid=(B, n_h),
            in_specs=[
                pl.BlockSpec((1, th, W, dim), lambda bi, hi: (bi, hi, 0, 0)),
                pl.BlockSpec((dim, C), lambda bi, hi: (0, 0)),   # constant index ->
                pl.BlockSpec((fc, 8), lambda bi, hi: (0, 0)),    # fetched once, stays
                pl.BlockSpec((8, fc), lambda bi, hi: (0, 0)),    # resident in VMEM
                pl.BlockSpec((1, fc), lambda bi, hi: (0, 0)),
                pl.BlockSpec((1, fc), lambda bi, hi: (0, 0)),
            ],
            out_specs=pl.BlockSpec((1, th, 4, W, fc),
                                   lambda bi, hi: (bi, hi, 0, 0, 0)),
        ),
        compiler_params=pltpu.CompilerParams(
            dimension_semantics=("parallel", "parallel"),
            vmem_limit_bytes=48 * 1024 * 1024,
        ),
    )(x4, wt, sdn, sup, g, b)

    # (B, H, 4, W, 4c) has the exact memory layout of (B, 4H, 4W, c): free reshape.
    out = out.reshape(B, 4 * H, 4 * W, c)
    # TODO(synk): fusing the final NHWC->NCHW permute needs an in-kernel (w,p2)->lane
    # interleave with channels moved to sublanes (real transpose, W % 32 == 0 only);
    # left to XLA for now.
    return jnp.transpose(out, (0, 3, 1, 2))                           # (B, c, 4H, 4W)


def patch_unembed_reference(x, w_expand, gamma, beta, input_resolution, *,
                            matmul_dtype=jnp.float32):
    """Pure-JAX reference mirroring the PyTorch module step by step."""
    H, W = input_resolution
    B, L, dim = x.shape
    C = w_expand.shape[0]
    c = C // 16
    y = jnp.dot(x.astype(matmul_dtype), w_expand.T.astype(matmul_dtype),
                preferred_element_type=jnp.float32)                   # (B, L, C)
    y = y.reshape(B, H, W, 4, 4, c)                                   # b h w p1 p2 c
    y = jnp.transpose(y, (0, 1, 3, 2, 4, 5))                          # b h p1 w p2 c
    y = y.reshape(B, 16 * H * W, c)
    mean = jnp.mean(y, axis=-1, keepdims=True)
    var = jnp.mean((y - mean) ** 2, axis=-1, keepdims=True)
    y = (y - mean) * lax.rsqrt(var + EPS) * gamma + beta
    y = y.reshape(B, 4 * H, 4 * W, c)
    return jnp.transpose(y, (0, 3, 1, 2))


if __name__ == "__main__":
    B, H, W = 2, 8, 8
    dim, final_dim = 128, 64            # module defaults: dim_scale=4, final_dim=64
    key = jax.random.PRNGKey(0)
    kx, kw, kg, kb = jax.random.split(key, 4)

    x = jax.random.normal(kx, (B, H * W, dim), dtype=jnp.float32)
    # nn.Linear(dim, 16*final_dim, bias=False) weight: (16*final_dim, dim)
    w_expand = 0.05 * jax.random.normal(kw, (16 * final_dim, dim), dtype=jnp.float32)
    gamma = 1.0 + 0.1 * jax.random.normal(kg, (final_dim,), dtype=jnp.float32)
    beta = 0.1 * jax.random.normal(kb, (final_dim,), dtype=jnp.float32)

    out = patch_unembed_pallas(x, w_expand, gamma, beta, (H, W))
    out = jax.block_until_ready(out)
    assert out.shape == (B, final_dim, 4 * H, 4 * W), out.shape

    # Check vs a reference using the same bf16 expand-matmul quantization
    # (the kernel's LN segment matmuls are bf16-operand now, so allow ~1e-2 slack).
    ref_bf16 = patch_unembed_reference(x, w_expand, gamma, beta, (H, W),
                                       matmul_dtype=jnp.bfloat16)
    err_tight = float(jnp.max(jnp.abs(out - ref_bf16)))
    assert jnp.allclose(out, ref_bf16, atol=5e-2, rtol=5e-2), err_tight

    # Loose sanity check vs the full-f32 module semantics.
    ref_f32 = patch_unembed_reference(x, w_expand, gamma, beta, (H, W),
                                      matmul_dtype=jnp.float32)
    err_loose = float(jnp.max(jnp.abs(out - ref_f32)))
    assert jnp.allclose(out, ref_f32, atol=1e-1, rtol=1e-1), err_loose

    print("KERNEL_OK")
</pallas_src>

<mosaic_0001>
module attributes {stable_mosaic.version = 11 : i64} {
  func.func @_patch_unembed_kernel(%arg0: i32, %arg1: i32, %arg2: memref<1x8x8x128xf32, #tpu.memory_space<vmem>>, %arg3: memref<128x1024xbf16, #tpu.memory_space<vmem>>, %arg4: memref<256x8xbf16, #tpu.memory_space<vmem>>, %arg5: memref<8x256xbf16, #tpu.memory_space<vmem>>, %arg6: memref<1x256xf32, #tpu.memory_space<vmem>>, %arg7: memref<1x256xf32, #tpu.memory_space<vmem>>, %arg8: memref<1x8x4x8x256xf32, #tpu.memory_space<vmem>>) attributes {dimension_semantics = [#tpu.dimension_semantics<parallel>, #tpu.dimension_semantics<parallel>], iteration_bounds = array<i64: 2, 1>, scalar_prefetch = 0 : i64, scratch_operands = 0 : i64, tpu.core_type = #tpu.core_type<tc>, window_params = [{transform_indices = @transform_0, window_bounds = array<i64: 1, 8, 8, 128>}, {pipeline_mode = #tpu.pipeline_mode<synchronous>, transform_indices = @transform_1, window_bounds = array<i64: 128, 1024>}, {pipeline_mode = #tpu.pipeline_mode<synchronous>, transform_indices = @transform_2, window_bounds = array<i64: 256, 8>}, {pipeline_mode = #tpu.pipeline_mode<synchronous>, transform_indices = @transform_3, window_bounds = array<i64: 8, 256>}, {pipeline_mode = #tpu.pipeline_mode<synchronous>, transform_indices = @transform_4, window_bounds = array<i64: 1, 256>}, {pipeline_mode = #tpu.pipeline_mode<synchronous>, transform_indices = @transform_5, window_bounds = array<i64: 1, 256>}, {transform_indices = @transform_6, window_bounds = array<i64: 1, 8, 4, 8, 256>}]} {
    %c0 = arith.constant 0 : index
    %c0_0 = arith.constant 0 : index
    %c0_1 = arith.constant 0 : index
    %c0_2 = arith.constant 0 : index
    %0 = vector.load %arg2[%c0, %c0_0, %c0_1, %c0_2] : memref<1x8x8x128xf32, #tpu.memory_space<vmem>>, vector<1x8x8x128xf32>
    %1 = vector.shape_cast %0 : vector<1x8x8x128xf32> to vector<64x128xf32>
    %2 = arith.truncf %1 : vector<64x128xf32> to vector<64x128xbf16>
    %c0_3 = arith.constant 0 : index
    %c0_4 = arith.constant 0 : index
    %3 = vector.load %arg4[%c0_3, %c0_4] : memref<256x8xbf16, #tpu.memory_space<vmem>>, vector<256x8xbf16>
    %c0_5 = arith.constant 0 : index
    %c0_6 = arith.constant 0 : index
    %4 = vector.load %arg5[%c0_5, %c0_6] : memref<8x256xbf16, #tpu.memory_space<vmem>>, vector<8x256xbf16>
    %c0_7 = arith.constant 0 : index
    %c0_8 = arith.constant 0 : index
    %5 = vector.load %arg6[%c0_7, %c0_8] : memref<1x256xf32, #tpu.memory_space<vmem>>, vector<1x256xf32>
    %c0_9 = arith.constant 0 : index
    %c0_10 = arith.constant 0 : index
    %6 = vector.load %arg7[%c0_9, %c0_10] : memref<1x256xf32, #tpu.memory_space<vmem>>, vector<1x256xf32>
    %c0_11 = arith.constant 0 : index
    %c0_12 = arith.constant 0 : index
    %7 = vector.load %arg3[%c0_11, %c0_12] : memref<128x1024xbf16, #tpu.memory_space<vmem>>, vector<128x256xbf16>
    %cst = arith.constant dense<0.000000e+00> : vector<64x256xf32>
    %8 = tpu.matmul %2, %7, %cst {dimension_numbers = #tpu.dot_dimension_numbers<[1], [0], [0], [1], [0, 0, 1, 1], [], []>} : vector<64x128xbf16>, vector<128x256xbf16>, vector<64x256xf32> -> vector<64x256xf32>
    %9 = arith.truncf %8 : vector<64x256xf32> to vector<64x256xbf16>
    %cst_13 = arith.constant dense<0.000000e+00> : vector<64x8xf32>
    %10 = tpu.matmul %9, %3, %cst_13 {dimension_numbers = #tpu.dot_dimension_numbers<[1], [0], [0], [1], [0, 0, 1, 1], [], []>} : vector<64x256xbf16>, vector<256x8xbf16>, vector<64x8xf32> -> vector<64x8xf32>
    %11 = arith.truncf %10 : vector<64x8xf32> to vector<64x8xbf16>
    %cst_14 = arith.constant dense<0.000000e+00> : vector<64x256xf32>
    %12 = tpu.matmul %11, %4, %cst_14 {dimension_numbers = #tpu.dot_dimension_numbers<[1], [0], [0], [1], [0, 0, 1, 1], [], []>} : vector<64x8xbf16>, vector<8x256xbf16>, vector<64x256xf32> -> vector<64x256xf32>
    %13 = arith.subf %8, %12 : vector<64x256xf32>
    %14 = arith.mulf %13, %13 : vector<64x256xf32>
    %15 = arith.truncf %14 : vector<64x256xf32> to vector<64x256xbf16>
    %cst_15 = arith.constant dense<0.000000e+00> : vector<64x8xf32>
    %16 = tpu.matmul %15, %3, %cst_15 {dimension_numbers = #tpu.dot_dimension_numbers<[1], [0], [0], [1], [0, 0, 1, 1], [], []>} : vector<64x256xbf16>, vector<256x8xbf16>, vector<64x8xf32> -> vector<64x8xf32>
    %cst_16 = arith.constant 9.99999974E-6 : f32
    %17 = vector.broadcast %cst_16 : f32 to vector<64x8xf32>
    %18 = arith.addf %16, %17 : vector<64x8xf32>
    %19 = math.rsqrt %18 : vector<64x8xf32>
    %20 = arith.truncf %19 : vector<64x8xf32> to vector<64x8xbf16>
    %cst_17 = arith.constant dense<0.000000e+00> : vector<64x256xf32>
    %21 = tpu.matmul %20, %4, %cst_17 {dimension_numbers = #tpu.dot_dimension_numbers<[1], [0], [0], [1], [0, 0, 1, 1], [], []>} : vector<64x8xbf16>, vector<8x256xbf16>, vector<64x256xf32> -> vector<64x256xf32>
    %22 = arith.mulf %13, %21 : vector<64x256xf32>
    %23 = vector.broadcast %5 : vector<1x256xf32> to vector<64x256xf32>
    %24 = arith.mulf %22, %23 : vector<64x256xf32>
    %25 = vector.broadcast %6 : vector<1x256xf32> to vector<64x256xf32>
    %26 = arith.addf %24, %25 : vector<64x256xf32>
    %27 = vector.shape_cast %26 : vector<64x256xf32> to vector<8x8x256xf32>
    %c0_18 = arith.constant 0 : index
    %c0_19 = arith.constant 0 : index
    %c0_20 = arith.constant 0 : index
    %c0_21 = arith.constant 0 : index
    %c0_22 = arith.constant 0 : index
    %28 = vector.load %arg8[%c0_18, %c0_19, %c0_20, %c0_21, %c0_22] : memref<1x8x4x8x256xf32, #tpu.memory_space<vmem>>, vector<1x8x1x8x256xf32>
    %29 = vector.shape_cast %28 : vector<1x8x1x8x256xf32> to vector<8x8x256xf32>
    %30 = vector.shape_cast %27 : vector<8x8x256xf32> to vector<1x8x1x8x256xf32>
    tpu.vector_store %arg8[%c0_18, %c0_19, %c0_20, %c0_21, %c0_22], %30 {strides = array<i32>} : memref<1x8x4x8x256xf32, #tpu.memory_space<vmem>>, vector<1x8x1x8x256xf32>,
    %c0_23 = arith.constant 0 : index
    %c256 = arith.constant 256 : index
    %31 = vector.load %arg3[%c0_23, %c256] : memref<128x1024xbf16, #tpu.memory_space<vmem>>, vector<128x256xbf16>
    %cst_24 = arith.constant dense<0.000000e+00> : vector<64x256xf32>
    %32 = tpu.matmul %2, %31, %cst_24 {dimension_numbers = #tpu.dot_dimension_numbers<[1], [0], [0], [1], [0, 0, 1, 1], [], []>} : vector<64x128xbf16>, vector<128x256xbf16>, vector<64x256xf32> -> vector<64x256xf32>
    %33 = arith.truncf %32 : vector<64x256xf32> to vector<64x256xbf16>
    %cst_25 = arith.constant dense<0.000000e+00> : vector<64x8xf32>
    %34 = tpu.matmul %33, %3, %cst_25 {dimension_numbers = #tpu.dot_dimension_numbers<[1], [0], [0], [1], [0, 0, 1, 1], [], []>} : vector<64x256xbf16>, vector<256x8xbf16>, vector<64x8xf32> -> vector<64x8xf32>
    %35 = arith.truncf %34 : vector<64x8xf32> to vector<64x8xbf16>
    %cst_26 = arith.constant dense<0.000000e+00> : vector<64x256xf32>
    %36 = tpu.matmul %35, %4, %cst_26 {dimension_numbers = #tpu.dot_dimension_numbers<[1], [0], [0], [1], [0, 0, 1, 1], [], []>} : vector<64x8xbf16>, vector<8x256xbf16>, vector<64x256xf32> -> vector<64x256xf32>
    %37 = arith.subf %32, %36 : vector<64x256xf32>
    %38 = arith.mulf %37, %37 : vector<64x256xf32>
    %39 = arith.truncf %38 : vector<64x256xf32> to vector<64x256xbf16>
    %cst_27 = arith.constant dense<0.000000e+00> : vector<64x8xf32>
    %40 = tpu.matmul %39, %3, %cst_27 {dimension_numbers = #tpu.dot_dimension_numbers<[1], [0], [0], [1], [0, 0, 1, 1], [], []>} : vector<64x256xbf16>, vector<256x8xbf16>, vector<64x8xf32> -> vector<64x8xf32>
    %cst_28 = arith.constant 9.99999974E-6 : f32
    %41 = vector.broadcast %cst_28 : f32 to vector<64x8xf32>
    %42 = arith.addf %40, %41 : vector<64x8xf32>
    %43 = math.rsqrt %42 : vector<64x8xf32>
    %44 = arith.truncf %43 : vector<64x8xf32> to vector<64x8xbf16>
    %cst_29 = arith.constant dense<0.000000e+00> : vector<64x256xf32>
    %45 = tpu.matmul %44, %4, %cst_29 {dimension_numbers = #tpu.dot_dimension_numbers<[1], [0], [0], [1], [0, 0, 1, 1], [], []>} : vector<64x8xbf16>, vector<8x256xbf16>, vector<64x256xf32> -> vector<64x256xf32>
    %46 = arith.mulf %37, %45 : vector<64x256xf32>
    %47 = vector.broadcast %5 : vector<1x256xf32> to vector<64x256xf32>
    %48 = arith.mulf %46, %47 : vector<64x256xf32>
    %49 = vector.broadcast %6 : vector<1x256xf32> to vector<64x256xf32>
    %50 = arith.addf %48, %49 : vector<64x256xf32>
    %51 = vector.shape_cast %50 : vector<64x256xf32> to vector<8x8x256xf32>
    %c0_30 = arith.constant 0 : index
    %c0_31 = arith.constant 0 : index
    %c1 = arith.constant 1 : index
    %c0_32 = arith.constant 0 : index
    %c0_33 = arith.constant 0 : index
    %52 = vector.load %arg8[%c0_30, %c0_31, %c1, %c0_32, %c0_33] : memref<1x8x4x8x256xf32, #tpu.memory_space<vmem>>, vector<1x8x1x8x256xf32>
    %53 = vector.shape_cast %52 : vector<1x8x1x8x256xf32> to vector<8x8x256xf32>
    %54 = vector.shape_cast %51 : vector<8x8x256xf32> to vector<1x8x1x8x256xf32>
    tpu.vector_store %arg8[%c0_30, %c0_31, %c1, %c0_32, %c0_33], %54 {strides = array<i32>} : memref<1x8x4x8x256xf32, #tpu.memory_space<vmem>>, vector<1x8x1x8x256xf32>,
    %c0_34 = arith.constant 0 : index
    %c512 = arith.constant 512 : index
    %55 = vector.load %arg3[%c0_34, %c512] : memref<128x1024xbf16, #tpu.memory_space<vmem>>, vector<128x256xbf16>
    %cst_35 = arith.constant dense<0.000000e+00> : vector<64x256xf32>
    %56 = tpu.matmul %2, %55, %cst_35 {dimension_numbers = #tpu.dot_dimension_numbers<[1], [0], [0], [1], [0, 0, 1, 1], [], []>} : vector<64x128xbf16>, vector<128x256xbf16>, vector<64x256xf32> -> vector<64x256xf32>
    %57 = arith.truncf %56 : vector<64x256xf32> to vector<64x256xbf16>
    %cst_36 = arith.constant dense<0.000000e+00> : vector<64x8xf32>
    %58 = tpu.matmul %57, %3, %cst_36 {dimension_numbers = #tpu.dot_dimension_numbers<[1], [0], [0], [1], [0, 0, 1, 1], [], []>} : vector<64x256xbf16>, vector<256x8xbf16>, vector<64x8xf32> -> vector<64x8xf32>
    %59 = arith.truncf %58 : vector<64x8xf32> to vector<64x8xbf16>
    %cst_37 = arith.constant dense<0.000000e+00> : vector<64x256xf32>
    %60 = tpu.matmul %59, %4, %cst_37 {dimension_numbers = #tpu.dot_dimension_numbers<[1], [0], [0], [1], [0, 0, 1, 1], [], []>} : vector<64x8xbf16>, vector<8x256xbf16>, vector<64x256xf32> -> vector<64x256xf32>
    %61 = arith.subf %56, %60 : vector<64x256xf32>
    %62 = arith.mulf %61, %61 : vector<64x256xf32>
    %63 = arith.truncf %62 : vector<64x256xf32> to vector<64x256xbf16>
    %cst_38 = arith.constant dense<0.000000e+00> : vector<64x8xf32>
    %64 = tpu.matmul %63, %3, %cst_38 {dimension_numbers = #tpu.dot_dimension_numbers<[1], [0], [0], [1], [0, 0, 1, 1], [], []>} : vector<64x256xbf16>, vector<256x8xbf16>, vector<64x8xf32> -> vector<64x8xf32>
    %cst_39 = arith.constant 9.99999974E-6 : f32
    %65 = vector.broadcast %cst_39 : f32 to vector<64x8xf32>
    %66 = arith.addf %64, %65 : vector<64x8xf32>
    %67 = math.rsqrt %66 : vector<64x8xf32>
    %68 = arith.truncf %67 : vector<64x8xf32> to vector<64x8xbf16>
    %cst_40 = arith.constant dense<0.000000e+00> : vector<64x256xf32>
    %69 = tpu.matmul %68, %4, %cst_40 {dimension_numbers = #tpu.dot_dimension_numbers<[1], [0], [0], [1], [0, 0, 1, 1], [], []>} : vector<64x8xbf16>, vector<8x256xbf16>, vector<64x256xf32> -> vector<64x256xf32>
    %70 = arith.mulf %61, %69 : vector<64x256xf32>
    %71 = vector.broadcast %5 : vector<1x256xf32> to vector<64x256xf32>
    %72 = arith.mulf %70, %71 : vector<64x256xf32>
    %73 = vector.broadcast %6 : vector<1x256xf32> to vector<64x256xf32>
    %74 = arith.addf %72, %73 : vector<64x256xf32>
    %75 = vector.shape_cast %74 : vector<64x256xf32> to vector<8x8x256xf32>
    %c0_41 = arith.constant 0 : index
    %c0_42 = arith.constant 0 : index
    %c2 = arith.constant 2 : index
    %c0_43 = arith.constant 0 : index
    %c0_44 = arith.constant 0 : index
    %76 = vector.load %arg8[%c0_41, %c0_42, %c2, %c0_43, %c0_44] : memref<1x8x4x8x256xf32, #tpu.memory_space<vmem>>, vector<1x8x1x8x256xf32>
    %77 = vector.shape_cast %76 : vector<1x8x1x8x256xf32> to vector<8x8x256xf32>
    %78 = vector.shape_cast %75 : vector<8x8x256xf32> to vector<1x8x1x8x256xf32>
    tpu.vector_store %arg8[%c0_41, %c0_42, %c2, %c0_43, %c0_44], %78 {strides = array<i32>} : memref<1x8x4x8x256xf32, #tpu.memory_space<vmem>>, vector<1x8x1x8x256xf32>,
    %c0_45 = arith.constant 0 : index
    %c768 = arith.constant 768 : index
    %79 = vector.load %arg3[%c0_45, %c768] : memref<128x1024xbf16, #tpu.memory_space<vmem>>, vector<128x256xbf16>
    %cst_46 = arith.constant dense<0.000000e+00> : vector<64x256xf32>
    %80 = tpu.matmul %2, %79, %cst_46 {dimension_numbers = #tpu.dot_dimension_numbers<[1], [0], [0], [1], [0, 0, 1, 1], [], []>} : vector<64x128xbf16>, vector<128x256xbf16>, vector<64x256xf32> -> vector<64x256xf32>
    %81 = arith.truncf %80 : vector<64x256xf32> to vector<64x256xbf16>
    %cst_47 = arith.constant dense<0.000000e+00> : vector<64x8xf32>
    %82 = tpu.matmul %81, %3, %cst_47 {dimension_numbers = #tpu.dot_dimension_numbers<[1], [0], [0], [1], [0, 0, 1, 1], [], []>} : vector<64x256xbf16>, vector<256x8xbf16>, vector<64x8xf32> -> vector<64x8xf32>
    %83 = arith.truncf %82 : vector<64x8xf32> to vector<64x8xbf16>
    %cst_48 = arith.constant dense<0.000000e+00> : vector<64x256xf32>
    %84 = tpu.matmul %83, %4, %cst_48 {dimension_numbers = #tpu.dot_dimension_numbers<[1], [0], [0], [1], [0, 0, 1, 1], [], []>} : vector<64x8xbf16>, vector<8x256xbf16>, vector<64x256xf32> -> vector<64x256xf32>
    %85 = arith.subf %80, %84 : vector<64x256xf32>
    %86 = arith.mulf %85, %85 : vector<64x256xf32>
    %87 = arith.truncf %86 : vector<64x256xf32> to vector<64x256xbf16>
    %cst_49 = arith.constant dense<0.000000e+00> : vector<64x8xf32>
    %88 = tpu.matmul %87, %3, %cst_49 {dimension_numbers = #tpu.dot_dimension_numbers<[1], [0], [0], [1], [0, 0, 1, 1], [], []>} : vector<64x256xbf16>, vector<256x8xbf16>, vector<64x8xf32> -> vector<64x8xf32>
    %cst_50 = arith.constant 9.99999974E-6 : f32
    %89 = vector.broadcast %cst_50 : f32 to vector<64x8xf32>
    %90 = arith.addf %88, %89 : vector<64x8xf32>
    %91 = math.rsqrt %90 : vector<64x8xf32>
    %92 = arith.truncf %91 : vector<64x8xf32> to vector<64x8xbf16>
    %cst_51 = arith.constant dense<0.000000e+00> : vector<64x256xf32>
    %93 = tpu.matmul %92, %4, %cst_51 {dimension_numbers = #tpu.dot_dimension_numbers<[1], [0], [0], [1], [0, 0, 1, 1], [], []>} : vector<64x8xbf16>, vector<8x256xbf16>, vector<64x256xf32> -> vector<64x256xf32>
    %94 = arith.mulf %85, %93 : vector<64x256xf32>
    %95 = vector.broadcast %5 : vector<1x256xf32> to vector<64x256xf32>
    %96 = arith.mulf %94, %95 : vector<64x256xf32>
    %97 = vector.broadcast %6 : vector<1x256xf32> to vector<64x256xf32>
    %98 = arith.addf %96, %97 : vector<64x256xf32>
    %99 = vector.shape_cast %98 : vector<64x256xf32> to vector<8x8x256xf32>
    %c0_52 = arith.constant 0 : index
    %c0_53 = arith.constant 0 : index
    %c3 = arith.constant 3 : index
    %c0_54 = arith.constant 0 : index
    %c0_55 = arith.constant 0 : index
    %100 = vector.load %arg8[%c0_52, %c0_53, %c3, %c0_54, %c0_55] : memref<1x8x4x8x256xf32, #tpu.memory_space<vmem>>, vector<1x8x1x8x256xf32>
    %101 = vector.shape_cast %100 : vector<1x8x1x8x256xf32> to vector<8x8x256xf32>
    %102 = vector.shape_cast %99 : vector<8x8x256xf32> to vector<1x8x1x8x256xf32>
    tpu.vector_store %arg8[%c0_52, %c0_53, %c3, %c0_54, %c0_55], %102 {strides = array<i32>} : memref<1x8x4x8x256xf32, #tpu.memory_space<vmem>>, vector<1x8x1x8x256xf32>,
    return
  }
  func.func @transform_0(%arg0: i32, %arg1: i32) -> (i32, i32, i32, i32) {
    %c0_i32 = arith.constant 0 : i32
    %c0_i32_0 = arith.constant 0 : i32
    %c0_i32_1 = arith.constant 0 : i32
    return %arg0, %arg1, %c0_i32, %c0_i32_0 : i32, i32, i32, i32
  }
  func.func @transform_1(%arg0: i32, %arg1: i32) -> (i32, i32) {
    %c0_i32 = arith.constant 0 : i32
    %c0_i32_0 = arith.constant 0 : i32
    %c0_i32_1 = arith.constant 0 : i32
    return %c0_i32, %c0_i32_0 : i32, i32
  }
  func.func @transform_2(%arg0: i32, %arg1: i32) -> (i32, i32) {
    %c0_i32 = arith.constant 0 : i32
    %c0_i32_0 = arith.constant 0 : i32
    %c0_i32_1 = arith.constant 0 : i32
    return %c0_i32, %c0_i32_0 : i32, i32
  }
  func.func @transform_3(%arg0: i32, %arg1: i32) -> (i32, i32) {
    %c0_i32 = arith.constant 0 : i32
    %c0_i32_0 = arith.constant 0 : i32
    %c0_i32_1 = arith.constant 0 : i32
    return %c0_i32, %c0_i32_0 : i32, i32
  }
  func.func @transform_4(%arg0: i32, %arg1: i32) -> (i32, i32) {
    %c0_i32 = arith.constant 0 : i32
    %c0_i32_0 = arith.constant 0 : i32
    %c0_i32_1 = arith.constant 0 : i32
    return %c0_i32, %c0_i32_0 : i32, i32
  }
  func.func @transform_5(%arg0: i32, %arg1: i32) -> (i32, i32) {
    %c0_i32 = arith.constant 0 : i32
    %c0_i32_0 = arith.constant 0 : i32
    %c0_i32_1 = arith.constant 0 : i32
    return %c0_i32, %c0_i32_0 : i32, i32
  }
  func.func @transform_6(%arg0: i32, %arg1: i32) -> (i32, i32, i32, i32, i32) {
    %c0_i32 = arith.constant 0 : i32
    %c0_i32_0 = arith.constant 0 : i32
    %c0_i32_1 = arith.constant 0 : i32
    %c0_i32_2 = arith.constant 0 : i32
    return %arg0, %arg1, %c0_i32, %c0_i32_0, %c0_i32_1 : i32, i32, i32, i32, i32
  }
}

</mosaic_0001>

<llo_original>
// kernel: tpu_custom_call.1
$region0: #{tpu_custom_call.1}
  #allocation0 [shape = 'u32[]', space=smem, size = 0x4, offset = 0x4, fixed_abs, tag = 'smem constant byte address 0x4 - core index']
  #allocation1 [shape = 'u32[144,128]{1,0:T(1,128)}', space=vmem, size = 0x12000, scoped, tag = 'internal scratch']
  %s0 = inlined_call_operand.vmem [shape: f32[2,8,8,128], index: 0, kind: input, shape index: {}]
  %s1 = inlined_call_operand.hbm [shape: bf16[128,1024], index: 1, kind: input, shape index: {}]
  %s2 = inlined_call_operand.vmem [shape: bf16[256,8], index: 2, kind: input, shape index: {}]
  %s3 = inlined_call_operand.vmem [shape: bf16[8,256], index: 3, kind: input, shape index: {}]
  %s4 = inlined_call_operand.vmem [shape: f32[1,256], index: 4, kind: input, shape index: {}]
  %s5 = inlined_call_operand.vmem [shape: f32[1,256], index: 5, kind: input, shape index: {}]
  %s6 = inlined_call_operand.hbm [shape: f32[2,8,4,8,256], index: 6, kind: output, shape index: {}]
  %s7 = sld [smem:[#allocation0]]
  $region61: #{tpu_custom_call.1} parent=0
    _
  %s9 = ssub.s32 1, %s7
  %s10 = scalar_select 0, %s9, %s7
  $region1: #{tpu_custom_call.1} parent=0
    #allocation2 [shape = 'u8[262144]{0}', space=vmem, size = 0x40000, scoped, tag = 'input window, operand 1, single buffered']
    #allocation3 [shape = 's32[2]{0}', space=sflag, size = 0x8, scoped, tag = 'scoped memory for tpu_custom_call.1']
    #allocation4 [shape = 's32[2]{0}', space=sflag, size = 0x8, scoped, tag = 'scoped memory for tpu_custom_call.1']
    #allocation5 [shape = 'u8[524288]{0}', space=vmem, size = 0x80000, scoped, tag = 'output window, operand 0']
    %11 = vsyncpa [#allocation3], 0
    %12 = vsyncpa [#allocation4], 0
    %s13 = scalar_lea.sflag [#allocation4], 1
    %14 = vsyncpa %s13, 0
    loop: start=0, step=1, limit=4
    $region2: #{tpu_custom_call.1} parent=1 // loop_pre_header
      _
    $region3: #{tpu_custom_call.1} parent=1 // loop_header
      %s16 = sphi 0, %s20
      %p17 = scmp.ge.s32.totalorder %s16, 4
      %s23 = sphi 0, %s35
      %s24 = sphi 0, %s31
      %s25 = sphi 0, %s23
      %s26 = sphi 0, %s24
      %s27 = sphi 0, %s25
      %s28 = sphi 0, %s26
      %s40 = sphi 0, %s42
      %s43 = sphi 0, %s40
      %s44 = sphi 0, %s43
      %s60 = sphi 0, %s44
      %s64 = sphi 0, %s64
      %s66 = sphi 0, %s64
      %s67 = sphi 0, %s66
      %s81 = sphi 0, %s67
      %s85 = sphi 0, %s85
      %s87 = sphi 0, %s85
      %s88 = sphi 0, %s87
      %s102 = sphi 0, %s88
      %s106 = sphi 0, %s106
      %s108 = sphi 0, %s106
      %s109 = sphi 0, %s108
      %s123 = sphi 0, %s109
      %s127 = sphi 0, %s127
      %s129 = sphi 0, %s127
      %s130 = sphi 0, %s129
      %s144 = sphi 0, %s130
      %s148 = sphi 0, %s148
      %s150 = sphi 0, %s148
      %s151 = sphi 0, %s150
      %s165 = sphi 0, %s151
      %s173 = sphi 0, %s175
      %s176 = sphi 0, %s173
      %s177 = sphi 0, %s176
      %s193 = sphi 0, %s177
    $region4: #{tpu_custom_call.1} parent=1 // loop_header_branch
      %19 = sbr.rel (%p17) target = $region8
    $region5: #{tpu_custom_call.1} parent=1 // loop_body
      %s21 = ssub.s32 %s16, 1
      %s22 = ssub.s32 %s16, 2
      %s29 = sadd.s32 1, %s24
      %p30 = scmp.ge.s32.totalorder %s29, 1
      %s31 = scalar_select %p30, 0, %s29
      %s32 = sadd.s32 1, %s23
      %s33 = scalar_select %p30, %s32, %s23
      %p34 = scmp.ge.s32.totalorder %s33, 2
      %s35 = scalar_select %p34, 0, %s33
      %s36 = ssub.s32 %s23, %s35
      %s37 = ssub.s32 %s24, %s31
      %s38 = sor.u32 %s36, %s37
      %p39 = scmp.eq.s32.totalorder %s38, 0
      %s41 = sadd.s32 %s40, 1
      %s42 = scalar_select %p39, %s40, %s41
      %p45 = pneg %p39
      %p46 = scmp.eq.s32.totalorder %s16, 1
      %p47 = por %p45, %p46
      %p48 = scmp.ne.s32.totalorder %s40, %s43
      %p49 = scmp.eq.s32.totalorder %s16, 0
      %p50 = por %p48, %p49
      %p51 = scmp.ne.s32.totalorder %s40, %s43
      %p52 = scmp.eq.s32.totalorder %s21, 1
      %p53 = por %p51, %p52
      %p54 = scmp.ne.s32.totalorder %s43, %s44
      %p55 = scmp.eq.s32.totalorder %s21, 0
      %p56 = por %p54, %p55
      %p57 = scmp.ne.s32.totalorder %s43, %s44
      %p58 = scmp.eq.s32.totalorder %s22, 1
      %p59 = por %p57, %p58
      %p61 = scmp.ne.s32.totalorder %s44, %s60
      %p62 = scmp.eq.s32.totalorder %s22, 0
      %p63 = por %p61, %p62
      %s65 = sadd.s32 %s64, 1
      %p68 = scmp.eq.s32.totalorder %s16, 1
      %p69 = scmp.ne.s32.totalorder %s64, %s66
      %p70 = scmp.eq.s32.totalorder %s16, 0
      %p71 = por %p69, %p70
      %p72 = scmp.ne.s32.totalorder %s64, %s66
      %p73 = scmp.eq.s32.totalorder %s21, 1
      %p74 = por %p72, %p73
      %p75 = scmp.ne.s32.totalorder %s66, %s67
      %p76 = scmp.eq.s32.totalorder %s21, 0
      %p77 = por %p75, %p76
      %p78 = scmp.ne.s32.totalorder %s66, %s67
      %p79 = scmp.eq.s32.totalorder %s22, 1
      %p80 = por %p78, %p79
      %p82 = scmp.ne.s32.totalorder %s67, %s81
      %p83 = scmp.eq.s32.totalorder %s22, 0
      %p84 = por %p82, %p83
      %s86 = sadd.s32 %s85, 1
      %p89 = scmp.eq.s32.totalorder %s16, 1
      %p90 = scmp.ne.s32.totalorder %s85, %s87
      %p91 = scmp.eq.s32.totalorder %s16, 0
      %p92 = por %p90, %p91
      %p93 = scmp.ne.s32.totalorder %s85, %s87
      %p94 = scmp.eq.s32.totalorder %s21, 1
      %p95 = por %p93, %p94
      %p96 = scmp.ne.s32.totalorder %s87, %s88
      %p97 = scmp.eq.s32.totalorder %s21, 0
      %p98 = por %p96, %p97
      %p99 = scmp.ne.s32.totalorder %s87, %s88
      %p100 = scmp.eq.s32.totalorder %s22, 1
      %p101 = por %p99, %p100
      %p103 = scmp.ne.s32.totalorder %s88, %s102
      %p104 = scmp.eq.s32.totalorder %s22, 0
      %p105 = por %p103, %p104
      %s107 = sadd.s32 %s106, 1
      %p110 = scmp.eq.s32.totalorder %s16, 1
      %p111 = scmp.ne.s32.totalorder %s106, %s108
      %p112 = scmp.eq.s32.totalorder %s16, 0
      %p113 = por %p111, %p112
      %p114 = scmp.ne.s32.totalorder %s106, %s108
      %p115 = scmp.eq.s32.totalorder %s21, 1
      %p116 = por %p114, %p115
      %p117 = scmp.ne.s32.totalorder %s108, %s109
      %p118 = scmp.eq.s32.totalorder %s21, 0
      %p119 = por %p117, %p118
      %p120 = scmp.ne.s32.totalorder %s108, %s109
      %p121 = scmp.eq.s32.totalorder %s22, 1
      %p122 = por %p120, %p121
      %p124 = scmp.ne.s32.totalorder %s109, %s123
      %p125 = scmp.eq.s32.totalorder %s22, 0
      %p126 = por %p124, %p125
      %s128 = sadd.s32 %s127, 1
      %p131 = scmp.eq.s32.totalorder %s16, 1
      %p132 = scmp.ne.s32.totalorder %s127, %s129
      %p133 = scmp.eq.s32.totalorder %s16, 0
      %p134 = por %p132, %p133
      %p135 = scmp.ne.s32.totalorder %s127, %s129
      %p136 = scmp.eq.s32.totalorder %s21, 1
      %p137 = por %p135, %p136
      %p138 = scmp.ne.s32.totalorder %s129, %s130
      %p139 = scmp.eq.s32.totalorder %s21, 0
      %p140 = por %p138, %p139
      %p141 = scmp.ne.s32.totalorder %s129, %s130
      %p142 = scmp.eq.s32.totalorder %s22, 1
      %p143 = por %p141, %p142
      %p145 = scmp.ne.s32.totalorder %s130, %s144
      %p146 = scmp.eq.s32.totalorder %s22, 0
      %p147 = por %p145, %p146
      %s149 = sadd.s32 %s148, 1
      %p152 = scmp.eq.s32.totalorder %s16, 1
      %p153 = scmp.ne.s32.totalorder %s148, %s150
      %p154 = scmp.eq.s32.totalorder %s16, 0
      %p155 = por %p153, %p154
      %p156 = scmp.ne.s32.totalorder %s148, %s150
      %p157 = scmp.eq.s32.totalorder %s21, 1
      %p158 = por %p156, %p157
      %p159 = scmp.ne.s32.totalorder %s150, %s151
      %p160 = scmp.eq.s32.totalorder %s21, 0
      %p161 = por %p159, %p160
      %p162 = scmp.ne.s32.totalorder %s150, %s151
      %p163 = scmp.eq.s32.totalorder %s22, 1
      %p164 = por %p162, %p163
      %p166 = scmp.ne.s32.totalorder %s151, %s165
      %p167 = scmp.eq.s32.totalorder %s22, 0
      %p168 = por %p166, %p167
      %s169 = ssub.s32 %s23, %s35
      %s170 = ssub.s32 %s24, %s31
      %s171 = sor.u32 %s169, %s170
      %p172 = scmp.eq.s32.totalorder %s171, 0
      %s174 = sadd.s32 %s173, 1
      %s175 = scalar_select %p172, %s173, %s174
      %p178 = pneg %p172
      %p179 = scmp.eq.s32.totalorder %s16, 1
      %p180 = por %p178, %p179
      %p181 = scmp.ne.s32.totalorder %s173, %s176
      %p182 = scmp.eq.s32.totalorder %s16, 0
      %p183 = por %p181, %p182
      %p184 = scmp.ne.s32.totalorder %s173, %s176
      %p185 = scmp.eq.s32.totalorder %s21, 1
      %p186 = por %p184, %p185
      %p187 = scmp.ne.s32.totalorder %s176, %s177
      %p188 = scmp.eq.s32.totalorder %s21, 0
      %p189 = por %p187, %p188
      %p190 = scmp.ne.s32.totalorder %s176, %s177
      %p191 = scmp.eq.s32.totalorder %s22, 1
      %p192 = por %p190, %p191
      %p194 = scmp.ne.s32.totalorder %s177, %s193
      %p195 = scmp.eq.s32.totalorder %s22, 0
      %p196 = por %p194, %p195
      %p197 = scmp.le.s32.totalorder 1, %s16
      %p198 = scmp.lt.s32.totalorder %s16, 3
      %p199 = pnand %p197, %p198
      %p200 = pneg %p199
      // Predicated region
      $region9: #{tpu_custom_call.1} parent=5 // pred_check
        _
      $region10: #{tpu_custom_call.1} parent=5 // pred_check_branch
        %202 = sbr.rel (%p199) target = $region12
      $region11: #{tpu_custom_call.1} parent=5 // pred_region
        %s203 = ssub.s32 %s16, 1
        // Predicated region
        $region13: #{tpu_custom_call.1} parent=11 // pred_check
          %p204 = pneg %p77
        $region14: #{tpu_custom_call.1} parent=11 // pred_check_branch
          %206 = sbr.rel (%p204) target = $region16
        $region15: #{tpu_custom_call.1} parent=11 // pred_region
          %s208 = ssub.s32 8192, 8192
          %209 = vsyncadd [#allocation3], %s208
          %s210 = sshll.u32 [#allocation2], 4
          %s211 = int_to_ptr.vmem [resolvable:$true] %s210
          %216 = dma.hbm_to_vmem [thread:$0]  %s1, 8192, %s211, [#allocation3], 512, 512, 32
        $region16: #{tpu_custom_call.1} parent=11 // pred_fallthru
          _
        // Predicated region
        $region17: #{tpu_custom_call.1} parent=11 // pred_check
          %p217 = pneg %p98
        $region18: #{tpu_custom_call.1} parent=11 // pred_check_branch
          %219 = sbr.rel (%p217) target = $region20
        $region19: #{tpu_custom_call.1} parent=11 // pred_region
          _
        $region20: #{tpu_custom_call.1} parent=11 // pred_fallthru
          _
        // Predicated region
        $region21: #{tpu_custom_call.1} parent=11 // pred_check
          %p220 = pneg %p119
        $region22: #{tpu_custom_call.1} parent=11 // pred_check_branch
          %222 = sbr.rel (%p220) target = $region24
        $region23: #{tpu_custom_call.1} parent=11 // pred_region
          _
        $region24: #{tpu_custom_call.1} parent=11 // pred_fallthru
          _
        // Predicated region
        $region25: #{tpu_custom_call.1} parent=11 // pred_check
          %p223 = pneg %p140
        $region26: #{tpu_custom_call.1} parent=11 // pred_check_branch
          %225 = sbr.rel (%p223) target = $region28
        $region27: #{tpu_custom_call.1} parent=11 // pred_region
          _
        $region28: #{tpu_custom_call.1} parent=11 // pred_fallthru
          _
        // Predicated region
        $region29: #{tpu_custom_call.1} parent=11 // pred_check
          %p226 = pneg %p161
        $region30: #{tpu_custom_call.1} parent=11 // pred_check_branch
          %228 = sbr.rel (%p226) target = $region32
        $region31: #{tpu_custom_call.1} parent=11 // pred_region
          _
        $region32: #{tpu_custom_call.1} parent=11 // pred_fallthru
          _
      $region12: #{tpu_custom_call.1} parent=5 // pred_fallthru
        _
      %p229 = scmp.lt.s32.totalorder %s16, 2
      // Predicated region
      $region33: #{tpu_custom_call.1} parent=5 // pred_check
        %p230 = pneg %p229
      $region34: #{tpu_custom_call.1} parent=5 // pred_check_branch
        %232 = sbr.rel (%p230) target = $region36
      $region35: #{tpu_custom_call.1} parent=5 // pred_region
        // Predicated region
        $region37: #{tpu_custom_call.1} parent=35 // pred_check
          %p233 = pneg %p50
        $region38: #{tpu_custom_call.1} parent=35 // pred_check_branch
          %235 = sbr.rel (%p233) target = $region40
        $region39: #{tpu_custom_call.1} parent=35 // pred_region
          %s236 = smul.u32 8, %s24
          %p237 = scmp.lt.s32.totalorder %s23, 1
          %s238 = scalar_select %p237, %s23, 1
          %p239 = scmp.lt.s32.totalorder %s236, 7
          %s240 = scalar_select %p239, %s236, 7
          %s241 = smul.addr %s238, 8
          %s242 = sadd.s32 %s240, %s241
          %s243 = smul.addr %s242, 8
          %s244 = scalar_lea.vmem %s0, %s243
          %s245 = smul.u32 8, %s24
        $region40: #{tpu_custom_call.1} parent=35 // pred_fallthru
          _
      $region36: #{tpu_custom_call.1} parent=5 // pred_fallthru
        _
      %p246 = scmp.le.s32.totalorder 1, %s16
      %p247 = scmp.lt.s32.totalorder %s16, 3
      %p248 = pnand %p246, %p247
      %p249 = pneg %p248
      // Predicated region
      $region41: #{tpu_custom_call.1} parent=5 // pred_check
        _
      $region42: #{tpu_custom_call.1} parent=5 // pred_check_branch
        %251 = sbr.rel (%p248) target = $region44
      $region43: #{tpu_custom_call.1} parent=5 // pred_region
        %s252 = ssub.s32 %s16, 1
        // Predicated region
        $region45: #{tpu_custom_call.1} parent=43 // pred_check
          %p253 = pneg %p77
        $region46: #{tpu_custom_call.1} parent=43 // pred_check_branch
          %255 = sbr.rel (%p253) target = $region48
        $region47: #{tpu_custom_call.1} parent=43 // pred_region
          %256 = dma.done [#allocation3], 8192
        $region48: #{tpu_custom_call.1} parent=43 // pred_fallthru
          _
        %s257 = smul.u32 8, %s26
        %p258 = scmp.lt.s32.totalorder %s25, 1
        %s259 = scalar_select %p258, %s25, 1
        %p260 = scmp.lt.s32.totalorder %s257, 7
        %s261 = scalar_select %p260, %s257, 7
        %s262 = smul.addr %s259, 8
        %s263 = sadd.s32 %s261, %s262
        %s264 = smul.addr %s263, 8
        %s265 = scalar_lea.vmem %s0, %s264
        %p266 = pneg %p56
        %p267 = pneg %p53
        %p268 = pneg %p77
        %p269 = pneg %p74
        %p270 = pneg %p98
        %p271 = pneg %p95
        %p272 = pneg %p119
        %p273 = pneg %p116
        %p274 = pneg %p140
        %p275 = pneg %p137
        %p276 = pneg %p161
        %p277 = pneg %p158
        %p278 = pneg %p189
        %p279 = pneg %p186
        %s280 = sand.u32 %s176, 1
        %s281 = scalar_lea.sflag [#allocation4], %s280
        %s282 = sand.u32 %s176, 1
        %s283 = smul.addr %s282, 512
        %s284 = scalar_lea.vmem [#allocation5], %s283
        %s285 = smul.u32 8, %s26
        %p286 = scmp.lt.s32.totalorder %s25, 1
        %s287 = scalar_select %p286, %s25, 1
        %p288 = scmp.lt.s32.totalorder %s285, 7
        %s289 = scalar_select %p288, %s285, 7
        %s290 = smul.addr %s287, 8
        %s291 = sadd.s32 %s289, %s290
        %s292 = smul.addr %s291, 8
        %s293 = scalar_lea.vmem %s0, %s292
        %s294 = smul.u32 8, %s26
        %s295 = smul.u32 8, %s26
        %v297 = vld [vmem:[%s293] sm:$0xff]
        %v298 = vld [vmem:[%s293 + $0x8] sm:$0xff]
        %v299 = vld [vmem:[%s293 + $0x10] sm:$0xff]
        %v300 = vld [vmem:[%s293 + $0x18] sm:$0xff]
        %v301 = vld [vmem:[%s293 + $0x20] sm:$0xff]
        %v302 = vld [vmem:[%s293 + $0x28] sm:$0xff]
        %v303 = vld [vmem:[%s293 + $0x30] sm:$0xff]
        %v304 = vld [vmem:[%s293 + $0x38] sm:$0xff]
        %v305 = vpack.c.bf16 %v298, %v297
        %v306 = vpack.c.bf16 %v300, %v299
        %v307 = vpack.c.bf16 %v302, %v301
        %v308 = vpack.c.bf16 %v304, %v303
        %v309 = vld [vmem:[%s2] sm:$0xf]
        %v310 = vld [vmem:[%s2 + $0x4] sm:$0xf]
        %v311 = vld [vmem:[%s2 + $0x8] sm:$0xf]
        %v312 = vld [vmem:[%s2 + $0xc] sm:$0xf]
        %v313 = vld [vmem:[%s2 + $0x10] sm:$0xf]
        %v314 = vld [vmem:[%s2 + $0x14] sm:$0xf]
        %v315 = vld [vmem:[%s2 + $0x18] sm:$0xf]
        %v316 = vld [vmem:[%s2 + $0x1c] sm:$0xf]
        %v317 = vld [vmem:[%s2 + $0x20] sm:$0xf]
        %v318 = vld [vmem:[%s2 + $0x24] sm:$0xf]
        %v319 = vld [vmem:[%s2 + $0x28] sm:$0xf]
        %v320 = vld [vmem:[%s2 + $0x2c] sm:$0xf]
        %v321 = vld [vmem:[%s2 + $0x30] sm:$0xf]
        %v322 = vld [vmem:[%s2 + $0x34] sm:$0xf]
        %v323 = vld [vmem:[%s2 + $0x38] sm:$0xf]
        %v324 = vld [vmem:[%s2 + $0x3c] sm:$0xf]
        %v325 = vld [vmem:[%s2 + $0x40] sm:$0xf]
        %v326 = vld [vmem:[%s2 + $0x44] sm:$0xf]
        %v327 = vld [vmem:[%s2 + $0x48] sm:$0xf]
        %v328 = vld [vmem:[%s2 + $0x4c] sm:$0xf]
        %v329 = vld [vmem:[%s2 + $0x50] sm:$0xf]
        %v330 = vld [vmem:[%s2 + $0x54] sm:$0xf]
        %v331 = vld [vmem:[%s2 + $0x58] sm:$0xf]
        %v332 = vld [vmem:[%s2 + $0x5c] sm:$0xf]
        %v333 = vld [vmem:[%s2 + $0x60] sm:$0xf]
        %v334 = vld [vmem:[%s2 + $0x64] sm:$0xf]
        %v335 = vld [vmem:[%s2 + $0x68] sm:$0xf]
        %v336 = vld [vmem:[%s2 + $0x6c] sm:$0xf]
        %v337 = vld [vmem:[%s2 + $0x70] sm:$0xf]
        %v338 = vld [vmem:[%s2 + $0x74] sm:$0xf]
        %v339 = vld [vmem:[%s2 + $0x78] sm:$0xf]
        %v340 = vld [vmem:[%s2 + $0x7c] sm:$0xf]
        %v341 = vld [vmem:[%s3] sm:$0xff]
        %v342 = vld [vmem:[%s4] sm:$0x3]
        %v343 = vld [vmem:[%s5] sm:$0x3]
        %v344 = vld [vmem:[#allocation2] sm:$0xff]
        %v345 = vld [vmem:[#allocation2 + $0x20] sm:$0xff]
        %v346 = vld [vmem:[#allocation2 + $0x40] sm:$0xff]
        %v347 = vld [vmem:[#allocation2 + $0x60] sm:$0xff]
        %v348 = vld [vmem:[#allocation2 + $0x80] sm:$0xff]
        %v349 = vld [vmem:[#allocation2 + $0xa0] sm:$0xff]
        %v350 = vld [vmem:[#allocation2 + $0xc0] sm:$0xff]
        %v351 = vld [vmem:[#allocation2 + $0xe0] sm:$0xff]
        %v352 = vld [vmem:[#allocation2 + $0x100] sm:$0xff]
        %v353 = vld [vmem:[#allocation2 + $0x120] sm:$0xff]
        %v354 = vld [vmem:[#allocation2 + $0x140] sm:$0xff]
        %v355 = vld [vmem:[#allocation2 + $0x160] sm:$0xff]
        %v356 = vld [vmem:[#allocation2 + $0x180] sm:$0xff]
        %v357 = vld [vmem:[#allocation2 + $0x1a0] sm:$0xff]
        %v358 = vld [vmem:[#allocation2 + $0x1c0] sm:$0xff]
        %v359 = vld [vmem:[#allocation2 + $0x1e0] sm:$0xff]
        %v376 = vunpack.c.l.b16 %v344
        %v377 = vunpack.c.h.b16 %v344
        %v378 = vunpack.c.l.b16 %v345
        %v379 = vunpack.c.h.b16 %v345
        %v380 = vunpack.c.l.b16 %v346
        %v381 = vunpack.c.h.b16 %v346
        %v382 = vunpack.c.l.b16 %v347
        %v383 = vunpack.c.h.b16 %v347
        %v384 = vunpack.c.l.b16 %v348
        %v385 = vunpack.c.h.b16 %v348
        %v386 = vunpack.c.l.b16 %v349
        %v387 = vunpack.c.h.b16 %v349
        %v388 = vunpack.c.l.b16 %v350
        %v389 = vunpack.c.h.b16 %v350
        %v390 = vunpack.c.l.b16 %v351
        %v391 = vunpack.c.h.b16 %v351
        %v392 = vunpack.c.l.b16 %v352
        %v393 = vunpack.c.h.b16 %v352
        %v394 = vunpack.c.l.b16 %v353
        %v395 = vunpack.c.h.b16 %v353
        %v396 = vunpack.c.l.b16 %v354
        %v397 = vunpack.c.h.b16 %v354
        %v398 = vunpack.c.l.b16 %v355
        %v399 = vunpack.c.h.b16 %v355
        %v400 = vunpack.c.l.b16 %v356
        %v401 = vunpack.c.h.b16 %v356
        %v402 = vunpack.c.l.b16 %v357
        %v403 = vunpack.c.h.b16 %v357
        %v404 = vunpack.c.l.b16 %v358
        %v405 = vunpack.c.h.b16 %v358
        %v406 = vunpack.c.l.b16 %v359
        %v407 = vunpack.c.h.b16 %v359
        %v408 = vpack.c.b16 %v378, %v376
        %v409 = vpack.c.b16 %v379, %v377
        %v410 = vpack.c.b16 %v382, %v380
        %v411 = vpack.c.b16 %v383, %v381
        %v412 = vpack.c.b16 %v386, %v384
        %v413 = vpack.c.b16 %v387, %v385
        %v414 = vpack.c.b16 %v390, %v388
        %v415 = vpack.c.b16 %v391, %v389
        %v416 = vpack.c.b16 %v394, %v392
        %v417 = vpack.c.b16 %v395, %v393
        %v418 = vpack.c.b16 %v398, %v396
        %v419 = vpack.c.b16 %v399, %v397
        %v420 = vpack.c.b16 %v402, %v400
        %v421 = vpack.c.b16 %v403, %v401
        %v422 = vpack.c.b16 %v406, %v404
        %v423 = vpack.c.b16 %v407, %v405
        %440 = vmatprep.subr.bf16.mxu0 %v409
        %441 = vmatpush1.bf16.msra.mxu0 %v408
        %442 = vmatprep.subr.bf16.mxu0 %v411
        %443 = vmatpush1.bf16.msra.mxu0 %v410
        %444 = vmatprep.subr.bf16.mxu0 %v413
        %445 = vmatpush1.bf16.msra.mxu0 %v412
        %446 = vmatprep.subr.bf16.mxu0 %v415
        %447 = vmatpush1.bf16.msra.mxu0 %v414
        %448 = vmatprep.subr.bf16.mxu0 %v417
        %449 = vmatpush1.bf16.msra.mxu0 %v416
        %450 = vmatprep.subr.bf16.mxu0 %v419
        %451 = vmatpush1.bf16.msra.mxu0 %v418
        %452 = vmatprep.subr.bf16.mxu0 %v421
        %453 = vmatpush1.bf16.msra.mxu0 %v420
        %454 = vmatprep.subr.bf16.mxu0 %v423
        %455 = vmatpush1.bf16.msra.mxu0 %v422
        %456 = vmatprep.subr.bf16.mxu0 0
        %457 = vmatpush1.bf16.msra.mxu0 0
        %458 = vmatprep.subr.bf16.mxu0 0
        %459 = vmatpush1.bf16.msra.mxu0 0
        %460 = vmatprep.subr.bf16.mxu0 0
        %461 = vmatpush1.bf16.msra.mxu0 0
        %462 = vmatprep.subr.bf16.mxu0 0
        %463 = vmatpush1.bf16.msra.mxu0 0
        %464 = vmatprep.subr.bf16.mxu0 0
        %465 = vmatpush1.bf16.msra.mxu0 0
        %466 = vmatprep.subr.bf16.mxu0 0
        %467 = vmatpush1.bf16.msra.mxu0 0
        %468 = vmatprep.subr.bf16.mxu0 0
        %469 = vmatpush1.bf16.msra.mxu0 0
        %470 = vmatprep.subr.bf16.mxu0 0
        %471 = vmatpush1.bf16.msra.mxu0 0
        %472 = vmatprep.mubr.bf16.mxu0 0
        %473 = vmatmul.mubr.bf16.gmra.mrb[0].mxu0 %v305
        %v474 = vpop.f32.mrb[0].mxu0
        %v475 = vadd.f32 0.0, %v474
        %v476 = vpop.f32.mrb[0].mxu0
        %v477 = vadd.f32 0.0, %v476
        %v478 = vpop.f32.mrb[0].mxu0
        %v479 = vadd.f32 0.0, %v478
        %v480 = vpop.f32.mrb[0].mxu0
        %v481 = vadd.f32 0.0, %v480
        %482 = vmatprep.mubr.bf16.mxu0 0
        %483 = vmatmul.mubr.bf16.gmra.mrb[0].mxu0 %v306
        %v484 = vpop.f32.mrb[0].mxu0
        %v485 = vadd.f32 0.0, %v484
        %v486 = vpop.f32.mrb[0].mxu0
        %v487 = vadd.f32 0.0, %v486
        %v488 = vpop.f32.mrb[0].mxu0
        %v489 = vadd.f32 0.0, %v488
        %v490 = vpop.f32.mrb[0].mxu0
        %v491 = vadd.f32 0.0, %v490
        %492 = vmatprep.mubr.bf16.mxu0 0
        %493 = vmatmul.mubr.bf16.gmra.mrb[0].mxu0 %v307
        %v494 = vpop.f32.mrb[0].mxu0
        %v495 = vadd.f32 0.0, %v494
        %v496 = vpop.f32.mrb[0].mxu0
        %v497 = vadd.f32 0.0, %v496
        %v498 = vpop.f32.mrb[0].mxu0
        %v499 = vadd.f32 0.0, %v498
        %v500 = vpop.f32.mrb[0].mxu0
        %v501 = vadd.f32 0.0, %v500
        %502 = vmatprep.mubr.bf16.mxu0 0
        %503 = vmatmul.mubr.bf16.gmra.mrb[0].mxu0 %v308
        %v504 = vpop.f32.mrb[0].mxu0
        %v505 = vadd.f32 0.0, %v504
        %v506 = vpop.f32.mrb[0].mxu0
        %v507 = vadd.f32 0.0, %v506
        %v508 = vpop.f32.mrb[0].mxu0
        %v509 = vadd.f32 0.0, %v508
        %v510 = vpop.f32.mrb[0].mxu0
        %v511 = vadd.f32 0.0, %v510
        %512 = vdwg.mxu0
        %v513 = vpack.c.bf16 %v479, %v475
        %v514 = vpack.c.bf16 %v481, %v477
        %v515 = vpack.c.bf16 %v489, %v485
        %v516 = vpack.c.bf16 %v491, %v487
        %v517 = vpack.c.bf16 %v499, %v495
        %v518 = vpack.c.bf16 %v501, %v497
        %v519 = vpack.c.bf16 %v509, %v505
        %v520 = vpack.c.bf16 %v511, %v507
        %v553 = vunpack.c.l.b16 %v309
        %v554 = vunpack.c.l.b16 %v310
        %v555 = vunpack.c.l.b16 %v311
        %v556 = vunpack.c.l.b16 %v312
        %v557 = vunpack.c.l.b16 %v313
        %v558 = vunpack.c.l.b16 %v314
        %v559 = vunpack.c.l.b16 %v315
        %v560 = vunpack.c.l.b16 %v316
        %v561 = vunpack.c.l.b16 %v317
        %v562 = vunpack.c.l.b16 %v318
        %v563 = vunpack.c.l.b16 %v319
        %v564 = vunpack.c.l.b16 %v320
        %v565 = vunpack.c.l.b16 %v321
        %v566 = vunpack.c.l.b16 %v322
        %v567 = vunpack.c.l.b16 %v323
        %v568 = vunpack.c.l.b16 %v324
        %v569 = vunpack.c.l.b16 %v325
        %v570 = vunpack.c.l.b16 %v326
        %v571 = vunpack.c.l.b16 %v327
        %v572 = vunpack.c.l.b16 %v328
        %v573 = vunpack.c.l.b16 %v329
        %v574 = vunpack.c.l.b16 %v330
        %v575 = vunpack.c.l.b16 %v331
        %v576 = vunpack.c.l.b16 %v332
        %v577 = vunpack.c.l.b16 %v333
        %v578 = vunpack.c.l.b16 %v334
        %v579 = vunpack.c.l.b16 %v335
        %v580 = vunpack.c.l.b16 %v336
        %v581 = vunpack.c.l.b16 %v337
        %v582 = vunpack.c.l.b16 %v338
        %v583 = vunpack.c.l.b16 %v339
        %v584 = vunpack.c.l.b16 %v340
        %v585 = vpack.c.b16 %v554, %v553
        %v586 = vpack.c.b16 %v556, %v555
        %v587 = vpack.c.b16 %v558, %v557
        %v588 = vpack.c.b16 %v560, %v559
        %v589 = vpack.c.b16 %v562, %v561
        %v590 = vpack.c.b16 %v564, %v563
        %v591 = vpack.c.b16 %v566, %v565
        %v592 = vpack.c.b16 %v568, %v567
        %v593 = vpack.c.b16 %v570, %v569
        %v594 = vpack.c.b16 %v572, %v571
        %v595 = vpack.c.b16 %v574, %v573
        %v596 = vpack.c.b16 %v576, %v575
        %v597 = vpack.c.b16 %v578, %v577
        %v598 = vpack.c.b16 %v580, %v579
        %v599 = vpack.c.b16 %v582, %v581
        %v600 = vpack.c.b16 %v584, %v583
        %617 = vmatprep.subr.bf16.mxu0 0
        %618 = vmatpush1.bf16.msra.mxu0 %v585
        %619 = vmatprep.subr.bf16.mxu0 0
        %620 = vmatpush1.bf16.msra.mxu0 %v586
        %621 = vmatprep.subr.bf16.mxu0 0
        %622 = vmatpush1.bf16.msra.mxu0 %v587
        %623 = vmatprep.subr.bf16.mxu0 0
        %624 = vmatpush1.bf16.msra.mxu0 %v588
        %625 = vmatprep.subr.bf16.mxu0 0
        %626 = vmatpush1.bf16.msra.mxu0 %v589
        %627 = vmatprep.subr.bf16.mxu0 0
        %628 = vmatpush1.bf16.msra.mxu0 %v590
        %629 = vmatprep.subr.bf16.mxu0 0
        %630 = vmatpush1.bf16.msra.mxu0 %v591
        %631 = vmatprep.subr.bf16.mxu0 0
        %632 = vmatpush1.bf16.msra.mxu0 %v592
        %633 = vmatprep.subr.bf16.mxu0 0
        %634 = vmatpush1.bf16.msra.mxu0 %v593
        %635 = vmatprep.subr.bf16.mxu0 0
        %636 = vmatpush1.bf16.msra.mxu0 %v594
        %637 = vmatprep.subr.bf16.mxu0 0
        %638 = vmatpush1.bf16.msra.mxu0 %v595
        %639 = vmatprep.subr.bf16.mxu0 0
        %640 = vmatpush1.bf16.msra.mxu0 %v596
        %641 = vmatprep.subr.bf16.mxu0 0
        %642 = vmatpush1.bf16.msra.mxu0 %v597
        %643 = vmatprep.subr.bf16.mxu0 0
        %644 = vmatpush1.bf16.msra.mxu0 %v598
        %645 = vmatprep.subr.bf16.mxu0 0
        %646 = vmatpush1.bf16.msra.mxu0 %v599
        %647 = vmatprep.subr.bf16.mxu0 0
        %648 = vmatpush1.bf16.msra.mxu0 %v600
        %649 = vmatprep.mubr.bf16.mxu0 %v514
        %650 = vmatmul.mubr.bf16.gmra.mrb[0].mxu0 %v513
        %v651 = vpop.f32.mrb[0].mxu0
        %v652 = vadd.f32 0.0, %v651
        %v653 = vpop.f32.mrb[0].mxu0
        %v654 = vpop.f32.mrb[0].mxu0
        %v655 = vadd.f32 0.0, %v654
        %v656 = vpop.f32.mrb[0].mxu0
        %657 = vmatprep.mubr.bf16.mxu0 %v516
        %658 = vmatmul.mubr.bf16.gmra.mrb[0].mxu0 %v515
        %v659 = vpop.f32.mrb[0].mxu0
        %v660 = vadd.f32 0.0, %v659
        %v661 = vpop.f32.mrb[0].mxu0
        %v662 = vpop.f32.mrb[0].mxu0
        %v663 = vadd.f32 0.0, %v662
        %v664 = vpop.f32.mrb[0].mxu0
        %665 = vmatprep.mubr.bf16.mxu0 %v518
        %666 = vmatmul.mubr.bf16.gmra.mrb[0].mxu0 %v517
        %v667 = vpop.f32.mrb[0].mxu0
        %v668 = vadd.f32 0.0, %v667
        %v669 = vpop.f32.mrb[0].mxu0
        %v670 = vpop.f32.mrb[0].mxu0
        %v671 = vadd.f32 0.0, %v670
        %v672 = vpop.f32.mrb[0].mxu0
        %673 = vmatprep.mubr.bf16.mxu0 %v520
        %674 = vmatmul.mubr.bf16.gmra.mrb[0].mxu0 %v519
        %v675 = vpop.f32.mrb[0].mxu0
        %v676 = vadd.f32 0.0, %v675
        %v677 = vpop.f32.mrb[0].mxu0
        %v678 = vpop.f32.mrb[0].mxu0
        %v679 = vadd.f32 0.0, %v678
        %v680 = vpop.f32.mrb[0].mxu0
        %681 = vdwg.mxu0
        %v682 = vpack.c.bf16 %v655, %v652
        %v683 = vpack.c.bf16 %v663, %v660
        %v684 = vpack.c.bf16 %v671, %v668
        %v685 = vpack.c.bf16 %v679, %v676
        %v687 = vunpack.c.l.b16 %v341
        %v688 = vunpack.c.h.b16 %v341
        %v689 = vpack.c.b16 %v687, %v687
        %v690 = vpack.c.b16 %v688, %v688
        %vm691 = vcmask 64512
        %v693 = vsel %vm691, %v682, 0
        %v696 = vsel %vm691, %v683, 0
        %v699 = vsel %vm691, %v684, 0
        %v702 = vsel %vm691, %v685, 0
        %vm704 = vcmask 1043456
        %v706 = vsel %vm704, %v689, 0
        %v709 = vsel %vm704, %v690, 0
        %711 = vmatprep.subr.bf16.mxu0 %v709
        %712 = vmatpush1.bf16.msra.mxu0 %v706
        %713 = vmatprep.subr.bf16.mxu0 0
        %714 = vmatpush1.bf16.msra.mxu0 0
        %715 = vmatprep.subr.bf16.mxu0 0
        %716 = vmatpush1.bf16.msra.mxu0 0
        %717 = vmatprep.subr.bf16.mxu0 0
        %718 = vmatpush1.bf16.msra.mxu0 0
        %719 = vmatprep.subr.bf16.mxu0 0
        %720 = vmatpush1.bf16.msra.mxu0 0
        %721 = vmatprep.subr.bf16.mxu0 0
        %722 = vmatpush1.bf16.msra.mxu0 0
        %723 = vmatprep.subr.bf16.mxu0 0
        %724 = vmatpush1.bf16.msra.mxu0 0
        %725 = vmatprep.subr.bf16.mxu0 0
        %726 = vmatpush1.bf16.msra.mxu0 0
        %727 = vmatprep.subr.bf16.mxu0 0
        %728 = vmatpush1.bf16.msra.mxu0 0
        %729 = vmatprep.subr.bf16.mxu0 0
        %730 = vmatpush1.bf16.msra.mxu0 0
        %731 = vmatprep.subr.bf16.mxu0 0
        %732 = vmatpush1.bf16.msra.mxu0 0
        %733 = vmatprep.subr.bf16.mxu0 0
        %734 = vmatpush1.bf16.msra.mxu0 0
        %735 = vmatprep.subr.bf16.mxu0 0
        %736 = vmatpush1.bf16.msra.mxu0 0
        %737 = vmatprep.subr.bf16.mxu0 0
        %738 = vmatpush1.bf16.msra.mxu0 0
        %739 = vmatprep.subr.bf16.mxu0 0
        %740 = vmatpush1.bf16.msra.mxu0 0
        %741 = vmatprep.subr.bf16.mxu0 0
        %742 = vmatpush1.bf16.msra.mxu0 0
        %743 = vmatprep.mubr.bf16.mxu0 0
        %744 = vmatmul.mubr.bf16.gmra.mrb[0].mxu0 %v693
        %v745 = vpop.f32.mrb[0].mxu0
        %v746 = vadd.f32 0.0, %v745
        %v747 = vpop.f32.mrb[0].mxu0
        %v748 = vadd.f32 0.0, %v747
        %v749 = vpop.f32.mrb[0].mxu0
        %v750 = vadd.f32 0.0, %v749
        %v751 = vpop.f32.mrb[0].mxu0
        %v752 = vadd.f32 0.0, %v751
        %753 = vmatprep.mubr.bf16.mxu0 0
        %754 = vmatmul.mubr.bf16.gmra.mrb[0].mxu0 %v696
        %v755 = vpop.f32.mrb[0].mxu0
        %v756 = vadd.f32 0.0, %v755
        %v757 = vpop.f32.mrb[0].mxu0
        %v758 = vadd.f32 0.0, %v757
        %v759 = vpop.f32.mrb[0].mxu0
        %v760 = vadd.f32 0.0, %v759
        %v761 = vpop.f32.mrb[0].mxu0
        %v762 = vadd.f32 0.0, %v761
        %763 = vmatprep.mubr.bf16.mxu0 0
        %764 = vmatmul.mubr.bf16.gmra.mrb[0].mxu0 %v699
        %v765 = vpop.f32.mrb[0].mxu0
        %v766 = vadd.f32 0.0, %v765
        %v767 = vpop.f32.mrb[0].mxu0
        %v768 = vadd.f32 0.0, %v767
        %v769 = vpop.f32.mrb[0].mxu0
        %v770 = vadd.f32 0.0, %v769
        %v771 = vpop.f32.mrb[0].mxu0
        %v772 = vadd.f32 0.0, %v771
        %773 = vmatprep.mubr.bf16.mxu0 0
        %774 = vmatmul.mubr.bf16.gmra.mrb[0].mxu0 %v702
        %v775 = vpop.f32.mrb[0].mxu0
        %v776 = vadd.f32 0.0, %v775
        %v777 = vpop.f32.mrb[0].mxu0
        %v778 = vadd.f32 0.0, %v777
        %v779 = vpop.f32.mrb[0].mxu0
        %v780 = vadd.f32 0.0, %v779
        %v781 = vpop.f32.mrb[0].mxu0
        %v782 = vadd.f32 0.0, %v781
        %783 = vdwg.mxu0
        %v784 = vsub.f32 %v475, %v746
        %v785 = vsub.f32 %v477, %v748
        %v786 = vsub.f32 %v479, %v750
        %v787 = vsub.f32 %v481, %v752
        %v788 = vsub.f32 %v485, %v756
        %v789 = vsub.f32 %v487, %v758
        %v790 = vsub.f32 %v489, %v760
        %v791 = vsub.f32 %v491, %v762
        %v792 = vsub.f32 %v495, %v766
        %v793 = vsub.f32 %v497, %v768
        %v794 = vsub.f32 %v499, %v770
        %v795 = vsub.f32 %v501, %v772
        %v796 = vsub.f32 %v505, %v776
        %v797 = vsub.f32 %v507, %v778
        %v798 = vsub.f32 %v509, %v780
        %v799 = vsub.f32 %v511, %v782
        %v800 = vmul.f32 %v784, %v784
        %v801 = vmul.f32 %v785, %v785
        %v802 = vmul.f32 %v786, %v786
        %v803 = vmul.f32 %v787, %v787
        %v804 = vmul.f32 %v788, %v788
        %v805 = vmul.f32 %v789, %v789
        %v806 = vmul.f32 %v790, %v790
        %v807 = vmul.f32 %v791, %v791
        %v808 = vmul.f32 %v792, %v792
        %v809 = vmul.f32 %v793, %v793
        %v810 = vmul.f32 %v794, %v794
        %v811 = vmul.f32 %v795, %v795
        %v812 = vmul.f32 %v796, %v796
        %v813 = vmul.f32 %v797, %v797
        %v814 = vmul.f32 %v798, %v798
        %v815 = vmul.f32 %v799, %v799
        %v816 = vpack.c.bf16 %v802, %v800
        %v817 = vpack.c.bf16 %v803, %v801
        %v818 = vpack.c.bf16 %v806, %v804
        %v819 = vpack.c.bf16 %v807, %v805
        %v820 = vpack.c.bf16 %v810, %v808
        %v821 = vpack.c.bf16 %v811, %v809
        %v822 = vpack.c.bf16 %v814, %v812
        %v823 = vpack.c.bf16 %v815, %v813
        %824 = vmatprep.subr.bf16.mxu0 0
        %825 = vmatpush1.bf16.msra.mxu0 %v585
        %826 = vmatprep.subr.bf16.mxu0 0
        %827 = vmatpush1.bf16.msra.mxu0 %v586
        %828 = vmatprep.subr.bf16.mxu0 0
        %829 = vmatpush1.bf16.msra.mxu0 %v587
        %830 = vmatprep.subr.bf16.mxu0 0
        %831 = vmatpush1.bf16.msra.mxu0 %v588
        %832 = vmatprep.subr.bf16.mxu0 0
        %833 = vmatpush1.bf16.msra.mxu0 %v589
        %834 = vmatprep.subr.bf16.mxu0 0
        %835 = vmatpush1.bf16.msra.mxu0 %v590
        %836 = vmatprep.subr.bf16.mxu0 0
        %837 = vmatpush1.bf16.msra.mxu0 %v591
        %838 = vmatprep.subr.bf16.mxu0 0
        %839 = vmatpush1.bf16.msra.mxu0 %v592
        %840 = vmatprep.subr.bf16.mxu0 0
        %841 = vmatpush1.bf16.msra.mxu0 %v593
        %842 = vmatprep.subr.bf16.mxu0 0
        %843 = vmatpush1.bf16.msra.mxu0 %v594
        %844 = vmatprep.subr.bf16.mxu0 0
        %845 = vmatpush1.bf16.msra.mxu0 %v595
        %846 = vmatprep.subr.bf16.mxu0 0
        %847 = vmatpush1.bf16.msra.mxu0 %v596
        %848 = vmatprep.subr.bf16.mxu0 0
        %849 = vmatpush1.bf16.msra.mxu0 %v597
        %850 = vmatprep.subr.bf16.mxu0 0
        %851 = vmatpush1.bf16.msra.mxu0 %v598
        %852 = vmatprep.subr.bf16.mxu0 0
        %853 = vmatpush1.bf16.msra.mxu0 %v599
        %854 = vmatprep.subr.bf16.mxu0 0
        %855 = vmatpush1.bf16.msra.mxu0 %v600
        %856 = vmatprep.mubr.bf16.mxu0 %v817
        %857 = vmatmul.mubr.bf16.gmra.mrb[0].mxu0 %v816
        %v858 = vpop.f32.mrb[0].mxu0
        %v859 = vadd.f32 1e-05, %v858
        %v860 = vpop.f32.mrb[0].mxu0
        %v861 = vpop.f32.mrb[0].mxu0
        %v862 = vadd.f32 1e-05, %v861
        %v863 = vpop.f32.mrb[0].mxu0
        %864 = vmatprep.mubr.bf16.mxu0 %v819
        %865 = vmatmul.mubr.bf16.gmra.mrb[0].mxu0 %v818
        %v866 = vpop.f32.mrb[0].mxu0
        %v867 = vadd.f32 1e-05, %v866
        %v868 = vpop.f32.mrb[0].mxu0
        %v869 = vpop.f32.mrb[0].mxu0
        %v870 = vadd.f32 1e-05, %v869
        %v871 = vpop.f32.mrb[0].mxu0
        %872 = vmatprep.mubr.bf16.mxu0 %v821
        %873 = vmatmul.mubr.bf16.gmra.mrb[0].mxu0 %v820
        %v874 = vpop.f32.mrb[0].mxu0
        %v875 = vadd.f32 1e-05, %v874
        %v876 = vpop.f32.mrb[0].mxu0
        %v877 = vpop.f32.mrb[0].mxu0
        %v878 = vadd.f32 1e-05, %v877
        %v879 = vpop.f32.mrb[0].mxu0
        %880 = vmatprep.mubr.bf16.mxu0 %v823
        %881 = vmatmul.mubr.bf16.gmra.mrb[0].mxu0 %v822
        %v882 = vpop.f32.mrb[0].mxu0
        %v883 = vadd.f32 1e-05, %v882
        %v884 = vpop.f32.mrb[0].mxu0
        %v885 = vpop.f32.mrb[0].mxu0
        %v886 = vadd.f32 1e-05, %v885
        %v887 = vpop.f32.mrb[0].mxu0
        %888 = vdwg.mxu0
        %v889 = vrsqrt.pop %v859
        %v890 = vrsqrt.pop %v862
        %v891 = vrsqrt.pop %v867
        %v892 = vrsqrt.pop %v870
        %v893 = vrsqrt.pop %v875
        %v894 = vrsqrt.pop %v878
        %v895 = vrsqrt.pop %v883
        %v896 = vrsqrt.pop %v886
        %v897 = vpack.c.bf16 %v890, %v889
        %v898 = vpack.c.bf16 %v892, %v891
        %v899 = vpack.c.bf16 %v894, %v893
        %v900 = vpack.c.bf16 %v896, %v895
        %v902 = vsel %vm691, %v897, 0
        %v905 = vsel %vm691, %v898, 0
        %v908 = vsel %vm691, %v899, 0
        %v911 = vsel %vm691, %v900, 0
        %913 = vmatprep.subr.bf16.mxu0 %v709
        %914 = vmatpush1.bf16.msra.mxu0 %v706
        %915 = vmatprep.subr.bf16.mxu0 0
        %916 = vmatpush1.bf16.msra.mxu0 0
        %917 = vmatprep.subr.bf16.mxu0 0
        %918 = vmatpush1.bf16.msra.mxu0 0
        %919 = vmatprep.subr.bf16.mxu0 0
        %920 = vmatpush1.bf16.msra.mxu0 0
        %921 = vmatprep.subr.bf16.mxu0 0
        %922 = vmatpush1.bf16.msra.mxu0 0
        %923 = vmatprep.subr.bf16.mxu0 0
        %924 = vmatpush1.bf16.msra.mxu0 0
        %925 = vmatprep.subr.bf16.mxu0 0
        %926 = vmatpush1.bf16.msra.mxu0 0
        %927 = vmatprep.subr.bf16.mxu0 0
        %928 = vmatpush1.bf16.msra.mxu0 0
        %929 = vmatprep.subr.bf16.mxu0 0
        %930 = vmatpush1.bf16.msra.mxu0 0
        %931 = vmatprep.subr.bf16.mxu0 0
        %932 = vmatpush1.bf16.msra.mxu0 0
        %933 = vmatprep.subr.bf16.mxu0 0
        %934 = vmatpush1.bf16.msra.mxu0 0
        %935 = vmatprep.subr.bf16.mxu0 0
        %936 = vmatpush1.bf16.msra.mxu0 0
        %937 = vmatprep.subr.bf16.mxu0 0
        %938 = vmatpush1.bf16.msra.mxu0 0
        %939 = vmatprep.subr.bf16.mxu0 0
        %940 = vmatpush1.bf16.msra.mxu0 0
        %941 = vmatprep.subr.bf16.mxu0 0
        %942 = vmatpush1.bf16.msra.mxu0 0
        %943 = vmatprep.subr.bf16.mxu0 0
        %944 = vmatpush1.bf16.msra.mxu0 0
        %945 = vmatprep.mubr.bf16.mxu0 0
        %946 = vmatmul.mubr.bf16.gmra.mrb[0].mxu0 %v902
        %v947 = vpop.f32.mrb[0].mxu0
        %v948 = vadd.f32 0.0, %v947
        %v949 = vpop.f32.mrb[0].mxu0
        %v950 = vadd.f32 0.0, %v949
        %v951 = vpop.f32.mrb[0].mxu0
        %v952 = vadd.f32 0.0, %v951
        %v953 = vpop.f32.mrb[0].mxu0
        %v954 = vadd.f32 0.0, %v953
        %955 = vmatprep.mubr.bf16.mxu0 0
        %956 = vmatmul.mubr.bf16.gmra.mrb[0].mxu0 %v905
        %v957 = vpop.f32.mrb[0].mxu0
        %v958 = vadd.f32 0.0, %v957
        %v959 = vpop.f32.mrb[0].mxu0
        %v960 = vadd.f32 0.0, %v959
        %v961 = vpop.f32.mrb[0].mxu0
        %v962 = vadd.f32 0.0, %v961
        %v963 = vpop.f32.mrb[0].mxu0
        %v964 = vadd.f32 0.0, %v963
        %965 = vmatprep.mubr.bf16.mxu0 0
        %966 = vmatmul.mubr.bf16.gmra.mrb[0].mxu0 %v908
        %v967 = vpop.f32.mrb[0].mxu0
        %v968 = vadd.f32 0.0, %v967
        %v969 = vpop.f32.mrb[0].mxu0
        %v970 = vadd.f32 0.0, %v969
        %v971 = vpop.f32.mrb[0].mxu0
        %v972 = vadd.f32 0.0, %v971
        %v973 = vpop.f32.mrb[0].mxu0
        %v974 = vadd.f32 0.0, %v973
        %975 = vmatprep.mubr.bf16.mxu0 0
        %976 = vmatmul.mubr.bf16.gmra.mrb[0].mxu0 %v911
        %v977 = vpop.f32.mrb[0].mxu0
        %v978 = vadd.f32 0.0, %v977
        %v979 = vpop.f32.mrb[0].mxu0
        %v980 = vadd.f32 0.0, %v979
        %v981 = vpop.f32.mrb[0].mxu0
        %v982 = vadd.f32 0.0, %v981
        %v983 = vpop.f32.mrb[0].mxu0
        %v984 = vadd.f32 0.0, %v983
        %985 = vdwg.mxu0
        %v986 = vmul.f32 %v784, %v948
        %v987 = vmul.f32 %v785, %v950
        %v988 = vmul.f32 %v786, %v952
        %v989 = vmul.f32 %v787, %v954
        %v990 = vmul.f32 %v788, %v958
        %v991 = vmul.f32 %v789, %v960
        %v992 = vmul.f32 %v790, %v962
        %v993 = vmul.f32 %v791, %v964
        %v994 = vmul.f32 %v792, %v968
        %v995 = vmul.f32 %v793, %v970
        %v996 = vmul.f32 %v794, %v972
        %v997 = vmul.f32 %v795, %v974
        %v998 = vmul.f32 %v796, %v978
        %v999 = vmul.f32 %v797, %v980
        %v1000 = vmul.f32 %v798, %v982
        %v1001 = vmul.f32 %v799, %v984
        %v1003 = vlaneseq
        %v1004 = vshrl.u32 %v1003, 7
        %v1005 = vsub.s32 0, %v1004
        %v1006 = vrot.slane %v342, %v1005
        %v1007 = vlaneseq
        %v1008 = vshrl.u32 %v1007, 7
        %v1009 = vsub.s32 1, %v1008
        %v1010 = vrot.slane %v342, %v1009
        %v1013 = vmul.f32 %v986, %v1006
        %v1014 = vmul.f32 %v987, %v1010
        %v1015 = vmul.f32 %v988, %v1006
        %v1016 = vmul.f32 %v989, %v1010
        %v1017 = vmul.f32 %v990, %v1006
        %v1018 = vmul.f32 %v991, %v1010
        %v1019 = vmul.f32 %v992, %v1006
        %v1020 = vmul.f32 %v993, %v1010
        %v1021 = vmul.f32 %v994, %v1006
        %v1022 = vmul.f32 %v995, %v1010
        %v1023 = vmul.f32 %v996, %v1006
        %v1024 = vmul.f32 %v997, %v1010
        %v1025 = vmul.f32 %v998, %v1006
        %v1026 = vmul.f32 %v999, %v1010
        %v1027 = vmul.f32 %v1000, %v1006
        %v1028 = vmul.f32 %v1001, %v1010
        %v1030 = vlaneseq
        %v1031 = vshrl.u32 %v1030, 7
        %v1032 = vsub.s32 0, %v1031
        %v1033 = vrot.slane %v343, %v1032
        %v1034 = vlaneseq
        %v1035 = vshrl.u32 %v1034, 7
        %v1036 = vsub.s32 1, %v1035
        %v1037 = vrot.slane %v343, %v1036
        %v1040 = vadd.f32 %v1013, %v1033
        %v1041 = vadd.f32 %v1014, %v1037
        %v1042 = vadd.f32 %v1015, %v1033
        %v1043 = vadd.f32 %v1016, %v1037
        %v1044 = vadd.f32 %v1017, %v1033
        %v1045 = vadd.f32 %v1018, %v1037
        %v1046 = vadd.f32 %v1019, %v1033
        %v1047 = vadd.f32 %v1020, %v1037
        %v1048 = vadd.f32 %v1021, %v1033
        %v1049 = vadd.f32 %v1022, %v1037
        %v1050 = vadd.f32 %v1023, %v1033
        %v1051 = vadd.f32 %v1024, %v1037
        %v1052 = vadd.f32 %v1025, %v1033
        %v1053 = vadd.f32 %v1026, %v1037
        %v1054 = vadd.f32 %v1027, %v1033
        %v1055 = vadd.f32 %v1028, %v1037
        %1056 = vst [vmem:[%s284] sm:$0xff] %v1040
        %1057 = vst [vmem:[%s284 + $0x8] sm:$0xff] %v1041
        %1058 = vst [vmem:[%s284 + $0x40] sm:$0xff] %v1042
        %1059 = vst [vmem:[%s284 + $0x48] sm:$0xff] %v1043
        %1060 = vst [vmem:[%s284 + $0x80] sm:$0xff] %v1044
        %1061 = vst [vmem:[%s284 + $0x88] sm:$0xff] %v1045
        %1062 = vst [vmem:[%s284 + $0xc0] sm:$0xff] %v1046
        %1063 = vst [vmem:[%s284 + $0xc8] sm:$0xff] %v1047
        %1064 = vst [vmem:[%s284 + $0x100] sm:$0xff] %v1048
        %1065 = vst [vmem:[%s284 + $0x108] sm:$0xff] %v1049
        %1066 = vst [vmem:[%s284 + $0x140] sm:$0xff] %v1050
        %1067 = vst [vmem:[%s284 + $0x148] sm:$0xff] %v1051
        %1068 = vst [vmem:[%s284 + $0x180] sm:$0xff] %v1052
        %1069 = vst [vmem:[%s284 + $0x188] sm:$0xff] %v1053
        %1070 = vst [vmem:[%s284 + $0x1c0] sm:$0xff] %v1054
        %1071 = vst [vmem:[%s284 + $0x1c8] sm:$0xff] %v1055
        %v1072 = vld [vmem:[#allocation2 + $0x8] sm:$0xff]
        %v1073 = vld [vmem:[#allocation2 + $0x28] sm:$0xff]
        %v1074 = vld [vmem:[#allocation2 + $0x48] sm:$0xff]
        %v1075 = vld [vmem:[#allocation2 + $0x68] sm:$0xff]
        %v1076 = vld [vmem:[#allocation2 + $0x88] sm:$0xff]
        %v1077 = vld [vmem:[#allocation2 + $0xa8] sm:$0xff]
        %v1078 = vld [vmem:[#allocation2 + $0xc8] sm:$0xff]
        %v1079 = vld [vmem:[#allocation2 + $0xe8] sm:$0xff]
        %v1080 = vld [vmem:[#allocation2 + $0x108] sm:$0xff]
        %v1081 = vld [vmem:[#allocation2 + $0x128] sm:$0xff]
        %v1082 = vld [vmem:[#allocation2 + $0x148] sm:$0xff]
        %v1083 = vld [vmem:[#allocation2 + $0x168] sm:$0xff]
        %v1084 = vld [vmem:[#allocation2 + $0x188] sm:$0xff]
        %v1085 = vld [vmem:[#allocation2 + $0x1a8] sm:$0xff]
        %v1086 = vld [vmem:[#allocation2 + $0x1c8] sm:$0xff]
        %v1087 = vld [vmem:[#allocation2 + $0x1e8] sm:$0xff]
        %v1104 = vunpack.c.l.b16 %v1072
        %v1105 = vunpack.c.h.b16 %v1072
        %v1106 = vunpack.c.l.b16 %v1073
        %v1107 = vunpack.c.h.b16 %v1073
        %v1108 = vunpack.c.l.b16 %v1074
        %v1109 = vunpack.c.h.b16 %v1074
        %v1110 = vunpack.c.l.b16 %v1075
        %v1111 = vunpack.c.h.b16 %v1075
        %v1112 = vunpack.c.l.b16 %v1076
        %v1113 = vunpack.c.h.b16 %v1076
        %v1114 = vunpack.c.l.b16 %v1077
        %v1115 = vunpack.c.h.b16 %v1077
        %v1116 = vunpack.c.l.b16 %v1078
        %v1117 = vunpack.c.h.b16 %v1078
        %v1118 = vunpack.c.l.b16 %v1079
        %v1119 = vunpack.c.h.b16 %v1079
        %v1120 = vunpack.c.l.b16 %v1080
        %v1121 = vunpack.c.h.b16 %v1080
        %v1122 = vunpack.c.l.b16 %v1081
        %v1123 = vunpack.c.h.b16 %v1081
        %v1124 = vunpack.c.l.b16 %v1082
        %v1125 = vunpack.c.h.b16 %v1082
        %v1126 = vunpack.c.l.b16 %v1083
        %v1127 = vunpack.c.h.b16 %v1083
        %v1128 = vunpack.c.l.b16 %v1084
        %v1129 = vunpack.c.h.b16 %v1084
        %v1130 = vunpack.c.l.b16 %v1085
        %v1131 = vunpack.c.h.b16 %v1085
        %v1132 = vunpack.c.l.b16 %v1086
        %v1133 = vunpack.c.h.b16 %v1086
        %v1134 = vunpack.c.l.b16 %v1087
        %v1135 = vunpack.c.h.b16 %v1087
        %v1136 = vpack.c.b16 %v1106, %v1104
        %v1137 = vpack.c.b16 %v1107, %v1105
        %v1138 = vpack.c.b16 %v1110, %v1108
        %v1139 = vpack.c.b16 %v1111, %v1109
        %v1140 = vpack.c.b16 %v1114, %v1112
        %v1141 = vpack.c.b16 %v1115, %v1113
        %v1142 = vpack.c.b16 %v1118, %v1116
        %v1143 = vpack.c.b16 %v1119, %v1117
        %v1144 = vpack.c.b16 %v1122, %v1120
        %v1145 = vpack.c.b16 %v1123, %v1121
        %v1146 = vpack.c.b16 %v1126, %v1124
        %v1147 = vpack.c.b16 %v1127, %v1125
        %v1148 = vpack.c.b16 %v1130, %v1128
        %v1149 = vpack.c.b16 %v1131, %v1129
        %v1150 = vpack.c.b16 %v1134, %v1132
        %v1151 = vpack.c.b16 %v1135, %v1133
        %1168 = vmatprep.subr.bf16.mxu0 %v1137
        %1169 = vmatpush1.bf16.msra.mxu0 %v1136
        %1170 = vmatprep.subr.bf16.mxu0 %v1139
        %1171 = vmatpush1.bf16.msra.mxu0 %v1138
        %1172 = vmatprep.subr.bf16.mxu0 %v1141
        %1173 = vmatpush1.bf16.msra.mxu0 %v1140
        %1174 = vmatprep.subr.bf16.mxu0 %v1143
        %1175 = vmatpush1.bf16.msra.mxu0 %v1142
        %1176 = vmatprep.subr.bf16.mxu0 %v1145
        %1177 = vmatpush1.bf16.msra.mxu0 %v1144
        %1178 = vmatprep.subr.bf16.mxu0 %v1147
        %1179 = vmatpush1.bf16.msra.mxu0 %v1146
        %1180 = vmatprep.subr.bf16.mxu0 %v1149
        %1181 = vmatpush1.bf16.msra.mxu0 %v1148
        %1182 = vmatprep.subr.bf16.mxu0 %v1151
        %1183 = vmatpush1.bf16.msra.mxu0 %v1150
        %1184 = vmatprep.subr.bf16.mxu0 0
        %1185 = vmatpush1.bf16.msra.mxu0 0
        %1186 = vmatprep.subr.bf16.mxu0 0
        %1187 = vmatpush1.bf16.msra.mxu0 0
        %1188 = vmatprep.subr.bf16.mxu0 0
        %1189 = vmatpush1.bf16.msra.mxu0 0
        %1190 = vmatprep.subr.bf16.mxu0 0
        %1191 = vmatpush1.bf16.msra.mxu0 0
        %1192 = vmatprep.subr.bf16.mxu0 0
        %1193 = vmatpush1.bf16.msra.mxu0 0
        %1194 = vmatprep.subr.bf16.mxu0 0
        %1195 = vmatpush1.bf16.msra.mxu0 0
        %1196 = vmatprep.subr.bf16.mxu0 0
        %1197 = vmatpush1.bf16.msra.mxu0 0
        %1198 = vmatprep.subr.bf16.mxu0 0
        %1199 = vmatpush1.bf16.msra.mxu0 0
        %1200 = vmatprep.mubr.bf16.mxu0 0
        %1201 = vmatmul.mubr.bf16.gmra.mrb[0].mxu0 %v305
        %v1202 = vpop.f32.mrb[0].mxu0
        %v1203 = vadd.f32 0.0, %v1202
        %v1204 = vpop.f32.mrb[0].mxu0
        %v1205 = vadd.f32 0.0, %v1204
        %v1206 = vpop.f32.mrb[0].mxu0
        %v1207 = vadd.f32 0.0, %v1206
        %v1208 = vpop.f32.mrb[0].mxu0
        %v1209 = vadd.f32 0.0, %v1208
        %1210 = vmatprep.mubr.bf16.mxu0 0
        %1211 = vmatmul.mubr.bf16.gmra.mrb[0].mxu0 %v306
        %v1212 = vpop.f32.mrb[0].mxu0
        %v1213 = vadd.f32 0.0, %v1212
        %v1214 = vpop.f32.mrb[0].mxu0
        %v1215 = vadd.f32 0.0, %v1214
        %v1216 = vpop.f32.mrb[0].mxu0
        %v1217 = vadd.f32 0.0, %v1216
        %v1218 = vpop.f32.mrb[0].mxu0
        %v1219 = vadd.f32 0.0, %v1218
        %1220 = vmatprep.mubr.bf16.mxu0 0
        %1221 = vmatmul.mubr.bf16.gmra.mrb[0].mxu0 %v307
        %v1222 = vpop.f32.mrb[0].mxu0
        %v1223 = vadd.f32 0.0, %v1222
        %v1224 = vpop.f32.mrb[0].mxu0
        %v1225 = vadd.f32 0.0, %v1224
        %v1226 = vpop.f32.mrb[0].mxu0
        %v1227 = vadd.f32 0.0, %v1226
        %v1228 = vpop.f32.mrb[0].mxu0
        %v1229 = vadd.f32 0.0, %v1228
        %1230 = vmatprep.mubr.bf16.mxu0 0
        %1231 = vmatmul.mubr.bf16.gmra.mrb[0].mxu0 %v308
        %v1232 = vpop.f32.mrb[0].mxu0
        %v1233 = vadd.f32 0.0, %v1232
        %v1234 = vpop.f32.mrb[0].mxu0
        %v1235 = vadd.f32 0.0, %v1234
        %v1236 = vpop.f32.mrb[0].mxu0
        %v1237 = vadd.f32 0.0, %v1236
        %v1238 = vpop.f32.mrb[0].mxu0
        %v1239 = vadd.f32 0.0, %v1238
        %1240 = vdwg.mxu0
        %v1241 = vpack.c.bf16 %v1207, %v1203
        %v1242 = vpack.c.bf16 %v1209, %v1205
        %v1243 = vpack.c.bf16 %v1217, %v1213
        %v1244 = vpack.c.bf16 %v1219, %v1215
        %v1245 = vpack.c.bf16 %v1227, %v1223
        %v1246 = vpack.c.bf16 %v1229, %v1225
        %v1247 = vpack.c.bf16 %v1237, %v1233
        %v1248 = vpack.c.bf16 %v1239, %v1235
        %1249 = vmatprep.subr.bf16.mxu0 0
        %1250 = vmatpush1.bf16.msra.mxu0 %v585
        %1251 = vmatprep.subr.bf16.mxu0 0
        %1252 = vmatpush1.bf16.msra.mxu0 %v586
        %1253 = vmatprep.subr.bf16.mxu0 0
        %1254 = vmatpush1.bf16.msra.mxu0 %v587
        %1255 = vmatprep.subr.bf16.mxu0 0
        %1256 = vmatpush1.bf16.msra.mxu0 %v588
        %1257 = vmatprep.subr.bf16.mxu0 0
        %1258 = vmatpush1.bf16.msra.mxu0 %v589
        %1259 = vmatprep.subr.bf16.mxu0 0
        %1260 = vmatpush1.bf16.msra.mxu0 %v590
        %1261 = vmatprep.subr.bf16.mxu0 0
        %1262 = vmatpush1.bf16.msra.mxu0 %v591
        %1263 = vmatprep.subr.bf16.mxu0 0
        %1264 = vmatpush1.bf16.msra.mxu0 %v592
        %1265 = vmatprep.subr.bf16.mxu0 0
        %1266 = vmatpush1.bf16.msra.mxu0 %v593
        %1267 = vmatprep.subr.bf16.mxu0 0
        %1268 = vmatpush1.bf16.msra.mxu0 %v594
        %1269 = vmatprep.subr.bf16.mxu0 0
        %1270 = vmatpush1.bf16.msra.mxu0 %v595
        %1271 = vmatprep.subr.bf16.mxu0 0
        %1272 = vmatpush1.bf16.msra.mxu0 %v596
        %1273 = vmatprep.subr.bf16.mxu0 0
        %1274 = vmatpush1.bf16.msra.mxu0 %v597
        %1275 = vmatprep.subr.bf16.mxu0 0
        %1276 = vmatpush1.bf16.msra.mxu0 %v598
        %1277 = vmatprep.subr.bf16.mxu0 0
        %1278 = vmatpush1.bf16.msra.mxu0 %v599
        %1279 = vmatprep.subr.bf16.mxu0 0
        %1280 = vmatpush1.bf16.msra.mxu0 %v600
        %1281 = vmatprep.mubr.bf16.mxu0 %v1242
        %1282 = vmatmul.mubr.bf16.gmra.mrb[0].mxu0 %v1241
        %v1283 = vpop.f32.mrb[0].mxu0
        %v1284 = vadd.f32 0.0, %v1283
        %v1285 = vpop.f32.mrb[0].mxu0
        %v1286 = vpop.f32.mrb[0].mxu0
        %v1287 = vadd.f32 0.0, %v1286
        %v1288 = vpop.f32.mrb[0].mxu0
        %1289 = vmatprep.mubr.bf16.mxu0 %v1244
        %1290 = vmatmul.mubr.bf16.gmra.mrb[0].mxu0 %v1243
        %v1291 = vpop.f32.mrb[0].mxu0
        %v1292 = vadd.f32 0.0, %v1291
        %v1293 = vpop.f32.mrb[0].mxu0
        %v1294 = vpop.f32.mrb[0].mxu0
        %v1295 = vadd.f32 0.0, %v1294
        %v1296 = vpop.f32.mrb[0].mxu0
        %1297 = vmatprep.mubr.bf16.mxu0 %v1246
        %1298 = vmatmul.mubr.bf16.gmra.mrb[0].mxu0 %v1245
        %v1299 = vpop.f32.mrb[0].mxu0
        %v1300 = vadd.f32 0.0, %v1299
        %v1301 = vpop.f32.mrb[0].mxu0
        %v1302 = vpop.f32.mrb[0].mxu0
        %v1303 = vadd.f32 0.0, %v1302
        %v1304 = vpop.f32.mrb[0].mxu0
        %1305 = vmatprep.mubr.bf16.mxu0 %v1248
        %1306 = vmatmul.mubr.bf16.gmra.mrb[0].mxu0 %v1247
        %v1307 = vpop.f32.mrb[0].mxu0
        %v1308 = vadd.f32 0.0, %v1307
        %v1309 = vpop.f32.mrb[0].mxu0
        %v1310 = vpop.f32.mrb[0].mxu0
        %v1311 = vadd.f32 0.0, %v1310
        %v1312 = vpop.f32.mrb[0].mxu0
        %1313 = vdwg.mxu0
        %v1314 = vpack.c.bf16 %v1287, %v1284
        %v1315 = vpack.c.bf16 %v1295, %v1292
        %v1316 = vpack.c.bf16 %v1303, %v1300
        %v1317 = vpack.c.bf16 %v1311, %v1308
        %v1319 = vsel %vm691, %v1314, 0
        %v1322 = vsel %vm691, %v1315, 0
        %v1325 = vsel %vm691, %v1316, 0
        %v1328 = vsel %vm691, %v1317, 0
        %1330 = vmatprep.subr.bf16.mxu0 %v709
        %1331 = vmatpush1.bf16.msra.mxu0 %v706
        %1332 = vmatprep.subr.bf16.mxu0 0
        %1333 = vmatpush1.bf16.msra.mxu0 0
        %1334 = vmatprep.subr.bf16.mxu0 0
        %1335 = vmatpush1.bf16.msra.mxu0 0
        %1336 = vmatprep.subr.bf16.mxu0 0
        %1337 = vmatpush1.bf16.msra.mxu0 0
        %1338 = vmatprep.subr.bf16.mxu0 0
        %1339 = vmatpush1.bf16.msra.mxu0 0
        %1340 = vmatprep.subr.bf16.mxu0 0
        %1341 = vmatpush1.bf16.msra.mxu0 0
        %1342 = vmatprep.subr.bf16.mxu0 0
        %1343 = vmatpush1.bf16.msra.mxu0 0
        %1344 = vmatprep.subr.bf16.mxu0 0
        %1345 = vmatpush1.bf16.msra.mxu0 0
        %1346 = vmatprep.subr.bf16.mxu0 0
        %1347 = vmatpush1.bf16.msra.mxu0 0
        %1348 = vmatprep.subr.bf16.mxu0 0
        %1349 = vmatpush1.bf16.msra.mxu0 0
        %1350 = vmatprep.subr.bf16.mxu0 0
        %1351 = vmatpush1.bf16.msra.mxu0 0
        %1352 = vmatprep.subr.bf16.mxu0 0
        %1353 = vmatpush1.bf16.msra.mxu0 0
        %1354 = vmatprep.subr.bf16.mxu0 0
        %1355 = vmatpush1.bf16.msra.mxu0 0
        %1356 = vmatprep.subr.bf16.mxu0 0
        %1357 = vmatpush1.bf16.msra.mxu0 0
        %1358 = vmatprep.subr.bf16.mxu0 0
        %1359 = vmatpush1.bf16.msra.mxu0 0
        %1360 = vmatprep.subr.bf16.mxu0 0
        %1361 = vmatpush1.bf16.msra.mxu0 0
        %1362 = vmatprep.mubr.bf16.mxu0 0
        %1363 = vmatmul.mubr.bf16.gmra.mrb[0].mxu0 %v1319
        %v1364 = vpop.f32.mrb[0].mxu0
        %v1365 = vadd.f32 0.0, %v1364
        %v1366 = vpop.f32.mrb[0].mxu0
        %v1367 = vadd.f32 0.0, %v1366
        %v1368 = vpop.f32.mrb[0].mxu0
        %v1369 = vadd.f32 0.0, %v1368
        %v1370 = vpop.f32.mrb[0].mxu0
        %v1371 = vadd.f32 0.0, %v1370
        %1372 = vmatprep.mubr.bf16.mxu0 0
        %1373 = vmatmul.mubr.bf16.gmra.mrb[0].mxu0 %v1322
        %v1374 = vpop.f32.mrb[0].mxu0
        %v1375 = vadd.f32 0.0, %v1374
        %v1376 = vpop.f32.mrb[0].mxu0
        %v1377 = vadd.f32 0.0, %v1376
        %v1378 = vpop.f32.mrb[0].mxu0
        %v1379 = vadd.f32 0.0, %v1378
        %v1380 = vpop.f32.mrb[0].mxu0
        %v1381 = vadd.f32 0.0, %v1380
        %1382 = vmatprep.mubr.bf16.mxu0 0
        %1383 = vmatmul.mubr.bf16.gmra.mrb[0].mxu0 %v1325
        %v1384 = vpop.f32.mrb[0].mxu0
        %v1385 = vadd.f32 0.0, %v1384
        %v1386 = vpop.f32.mrb[0].mxu0
        %v1387 = vadd.f32 0.0, %v1386
        %v1388 = vpop.f32.mrb[0].mxu0
        %v1389 = vadd.f32 0.0, %v1388
        %v1390 = vpop.f32.mrb[0].mxu0
        %v1391 = vadd.f32 0.0, %v1390
        %1392 = vmatprep.mubr.bf16.mxu0 0
        %1393 = vmatmul.mubr.bf16.gmra.mrb[0].mxu0 %v1328
        %v1394 = vpop.f32.mrb[0].mxu0
        %v1395 = vadd.f32 0.0, %v1394
        %v1396 = vpop.f32.mrb[0].mxu0
        %v1397 = vadd.f32 0.0, %v1396
        %v1398 = vpop.f32.mrb[0].mxu0
        %v1399 = vadd.f32 0.0, %v1398
        %v1400 = vpop.f32.mrb[0].mxu0
        %v1401 = vadd.f32 0.0, %v1400
        %1402 = vdwg.mxu0
        %v1403 = vsub.f32 %v1203, %v1365
        %v1404 = vsub.f32 %v1205, %v1367
        %v1405 = vsub.f32 %v1207, %v1369
        %v1406 = vsub.f32 %v1209, %v1371
        %v1407 = vsub.f32 %v1213, %v1375
        %v1408 = vsub.f32 %v1215, %v1377
        %v1409 = vsub.f32 %v1217, %v1379
        %v1410 = vsub.f32 %v1219, %v1381
        %v1411 = vsub.f32 %v1223, %v1385
        %v1412 = vsub.f32 %v1225, %v1387
        %v1413 = vsub.f32 %v1227, %v1389
        %v1414 = vsub.f32 %v1229, %v1391
        %v1415 = vsub.f32 %v1233, %v1395
        %v1416 = vsub.f32 %v1235, %v1397
        %v1417 = vsub.f32 %v1237, %v1399
        %v1418 = vsub.f32 %v1239, %v1401
        %v1419 = vmul.f32 %v1403, %v1403
        %v1420 = vmul.f32 %v1404, %v1404
        %v1421 = vmul.f32 %v1405, %v1405
        %v1422 = vmul.f32 %v1406, %v1406
        %v1423 = vmul.f32 %v1407, %v1407
        %v1424 = vmul.f32 %v1408, %v1408
        %v1425 = vmul.f32 %v1409, %v1409
        %v1426 = vmul.f32 %v1410, %v1410
        %v1427 = vmul.f32 %v1411, %v1411
        %v1428 = vmul.f32 %v1412, %v1412
        %v1429 = vmul.f32 %v1413, %v1413
        %v1430 = vmul.f32 %v1414, %v1414
        %v1431 = vmul.f32 %v1415, %v1415
        %v1432 = vmul.f32 %v1416, %v1416
        %v1433 = vmul.f32 %v1417, %v1417
        %v1434 = vmul.f32 %v1418, %v1418
        %v1435 = vpack.c.bf16 %v1421, %v1419
        %v1436 = vpack.c.bf16 %v1422, %v1420
        %v1437 = vpack.c.bf16 %v1425, %v1423
        %v1438 = vpack.c.bf16 %v1426, %v1424
        %v1439 = vpack.c.bf16 %v1429, %v1427
        %v1440 = vpack.c.bf16 %v1430, %v1428
        %v1441 = vpack.c.bf16 %v1433, %v1431
        %v1442 = vpack.c.bf16 %v1434, %v1432
        %1443 = vmatprep.subr.bf16.mxu0 0
        %1444 = vmatpush1.bf16.msra.mxu0 %v585
        %1445 = vmatprep.subr.bf16.mxu0 0
        %1446 = vmatpush1.bf16.msra.mxu0 %v586
        %1447 = vmatprep.subr.bf16.mxu0 0
        %1448 = vmatpush1.bf16.msra.mxu0 %v587
        %1449 = vmatprep.subr.bf16.mxu0 0
        %1450 = vmatpush1.bf16.msra.mxu0 %v588
        %1451 = vmatprep.subr.bf16.mxu0 0
        %1452 = vmatpush1.bf16.msra.mxu0 %v589
        %1453 = vmatprep.subr.bf16.mxu0 0
        %1454 = vmatpush1.bf16.msra.mxu0 %v590
        %1455 = vmatprep.subr.bf16.mxu0 0
        %1456 = vmatpush1.bf16.msra.mxu0 %v591
        %1457 = vmatprep.subr.bf16.mxu0 0
        %1458 = vmatpush1.bf16.msra.mxu0 %v592
        %1459 = vmatprep.subr.bf16.mxu0 0
        %1460 = vmatpush1.bf16.msra.mxu0 %v593
        %1461 = vmatprep.subr.bf16.mxu0 0
        %1462 = vmatpush1.bf16.msra.mxu0 %v594
        %1463 = vmatprep.subr.bf16.mxu0 0
        %1464 = vmatpush1.bf16.msra.mxu0 %v595
        %1465 = vmatprep.subr.bf16.mxu0 0
        %1466 = vmatpush1.bf16.msra.mxu0 %v596
        %1467 = vmatprep.subr.bf16.mxu0 0
        %1468 = vmatpush1.bf16.msra.mxu0 %v597
        %1469 = vmatprep.subr.bf16.mxu0 0
        %1470 = vmatpush1.bf16.msra.mxu0 %v598
        %1471 = vmatprep.subr.bf16.mxu0 0
        %1472 = vmatpush1.bf16.msra.mxu0 %v599
        %1473 = vmatprep.subr.bf16.mxu0 0
        %1474 = vmatpush1.bf16.msra.mxu0 %v600
        %1475 = vmatprep.mubr.bf16.mxu0 %v1436
        %1476 = vmatmul.mubr.bf16.gmra.mrb[0].mxu0 %v1435
        %v1477 = vpop.f32.mrb[0].mxu0
        %v1478 = vadd.f32 1e-05, %v1477
        %v1479 = vpop.f32.mrb[0].mxu0
        %v1480 = vpop.f32.mrb[0].mxu0
        %v1481 = vadd.f32 1e-05, %v1480
        %v1482 = vpop.f32.mrb[0].mxu0
        %1483 = vmatprep.mubr.bf16.mxu0 %v1438
        %1484 = vmatmul.mubr.bf16.gmra.mrb[0].mxu0 %v1437
        %v1485 = vpop.f32.mrb[0].mxu0
        %v1486 = vadd.f32 1e-05, %v1485
        %v1487 = vpop.f32.mrb[0].mxu0
        %v1488 = vpop.f32.mrb[0].mxu0
        %v1489 = vadd.f32 1e-05, %v1488
        %v1490 = vpop.f32.mrb[0].mxu0
        %1491 = vmatprep.mubr.bf16.mxu0 %v1440
        %1492 = vmatmul.mubr.bf16.gmra.mrb[0].mxu0 %v1439
        %v1493 = vpop.f32.mrb[0].mxu0
        %v1494 = vadd.f32 1e-05, %v1493
        %v1495 = vpop.f32.mrb[0].mxu0
        %v1496 = vpop.f32.mrb[0].mxu0
        %v1497 = vadd.f32 1e-05, %v1496
        %v1498 = vpop.f32.mrb[0].mxu0
        %1499 = vmatprep.mubr.bf16.mxu0 %v1442
        %1500 = vmatmul.mubr.bf16.gmra.mrb[0].mxu0 %v1441
        %v1501 = vpop.f32.mrb[0].mxu0
        %v1502 = vadd.f32 1e-05, %v1501
        %v1503 = vpop.f32.mrb[0].mxu0
        %v1504 = vpop.f32.mrb[0].mxu0
        %v1505 = vadd.f32 1e-05, %v1504
        %v1506 = vpop.f32.mrb[0].mxu0
        %1507 = vdwg.mxu0
        %v1508 = vrsqrt.pop %v1478
        %v1509 = vrsqrt.pop %v1481
        %v1510 = vrsqrt.pop %v1486
        %v1511 = vrsqrt.pop %v1489
        %v1512 = vrsqrt.pop %v1494
        %v1513 = vrsqrt.pop %v1497
        %v1514 = vrsqrt.pop %v1502
        %v1515 = vrsqrt.pop %v1505
        %v1516 = vpack.c.bf16 %v1509, %v1508
        %v1517 = vpack.c.bf16 %v1511, %v1510
        %v1518 = vpack.c.bf16 %v1513, %v1512
        %v1519 = vpack.c.bf16 %v1515, %v1514
        %v1521 = vsel %vm691, %v1516, 0
        %v1524 = vsel %vm691, %v1517, 0
        %v1527 = vsel %vm691, %v1518, 0
        %v1530 = vsel %vm691, %v1519, 0
        %1532 = vmatprep.subr.bf16.mxu0 %v709
        %1533 = vmatpush1.bf16.msra.mxu0 %v706
        %1534 = vmatprep.subr.bf16.mxu0 0
        %1535 = vmatpush1.bf16.msra.mxu0 0
        %1536 = vmatprep.subr.bf16.mxu0 0
        %1537 = vmatpush1.bf16.msra.mxu0 0
        %1538 = vmatprep.subr.bf16.mxu0 0
        %1539 = vmatpush1.bf16.msra.mxu0 0
        %1540 = vmatprep.subr.bf16.mxu0 0
        %1541 = vmatpush1.bf16.msra.mxu0 0
        %1542 = vmatprep.subr.bf16.mxu0 0
        %1543 = vmatpush1.bf16.msra.mxu0 0
        %1544 = vmatprep.subr.bf16.mxu0 0
        %1545 = vmatpush1.bf16.msra.mxu0 0
        %1546 = vmatprep.subr.bf16.mxu0 0
        %1547 = vmatpush1.bf16.msra.mxu0 0
        %1548 = vmatprep.subr.bf16.mxu0 0
        %1549 = vmatpush1.bf16.msra.mxu0 0
        %1550 = vmatprep.subr.bf16.mxu0 0
        %1551 = vmatpush1.bf16.msra.mxu0 0
        %1552 = vmatprep.subr.bf16.mxu0 0
        %1553 = vmatpush1.bf16.msra.mxu0 0
        %1554 = vmatprep.subr.bf16.mxu0 0
        %1555 = vmatpush1.bf16.msra.mxu0 0
        %1556 = vmatprep.subr.bf16.mxu0 0
        %1557 = vmatpush1.bf16.msra.mxu0 0
        %1558 = vmatprep.subr.bf16.mxu0 0
        %1559 = vmatpush1.bf16.msra.mxu0 0
        %1560 = vmatprep.subr.bf16.mxu0 0
        %1561 = vmatpush1.bf16.msra.mxu0 0
        %1562 = vmatprep.subr.bf16.mxu0 0
        %1563 = vmatpush1.bf16.msra.mxu0 0
        %1564 = vmatprep.mubr.bf16.mxu0 0
        %1565 = vmatmul.mubr.bf16.gmra.mrb[0].mxu0 %v1521
        %v1566 = vpop.f32.mrb[0].mxu0
        %v1567 = vadd.f32 0.0, %v1566
        %v1568 = vpop.f32.mrb[0].mxu0
        %v1569 = vadd.f32 0.0, %v1568
        %v1570 = vpop.f32.mrb[0].mxu0
        %v1571 = vadd.f32 0.0, %v1570
        %v1572 = vpop.f32.mrb[0].mxu0
        %v1573 = vadd.f32 0.0, %v1572
        %1574 = vmatprep.mubr.bf16.mxu0 0
        %1575 = vmatmul.mubr.bf16.gmra.mrb[0].mxu0 %v1524
        %v1576 = vpop.f32.mrb[0].mxu0
        %v1577 = vadd.f32 0.0, %v1576
        %v1578 = vpop.f32.mrb[0].mxu0
        %v1579 = vadd.f32 0.0, %v1578
        %v1580 = vpop.f32.mrb[0].mxu0
        %v1581 = vadd.f32 0.0, %v1580
        %v1582 = vpop.f32.mrb[0].mxu0
        %v1583 = vadd.f32 0.0, %v1582
        %1584 = vmatprep.mubr.bf16.mxu0 0
        %1585 = vmatmul.mubr.bf16.gmra.mrb[0].mxu0 %v1527
        %v1586 = vpop.f32.mrb[0].mxu0
        %v1587 = vadd.f32 0.0, %v1586
        %v1588 = vpop.f32.mrb[0].mxu0
        %v1589 = vadd.f32 0.0, %v1588
        %v1590 = vpop.f32.mrb[0].mxu0
        %v1591 = vadd.f32 0.0, %v1590
        %v1592 = vpop.f32.mrb[0].mxu0
        %v1593 = vadd.f32 0.0, %v1592
        %1594 = vmatprep.mubr.bf16.mxu0 0
        %1595 = vmatmul.mubr.bf16.gmra.mrb[0].mxu0 %v1530
        %v1596 = vpop.f32.mrb[0].mxu0
        %v1597 = vadd.f32 0.0, %v1596
        %v1598 = vpop.f32.mrb[0].mxu0
        %v1599 = vadd.f32 0.0, %v1598
        %v1600 = vpop.f32.mrb[0].mxu0
        %v1601 = vadd.f32 0.0, %v1600
        %v1602 = vpop.f32.mrb[0].mxu0
        %v1603 = vadd.f32 0.0, %v1602
        %1604 = vdwg.mxu0
        %v1605 = vmul.f32 %v1403, %v1567
        %v1606 = vmul.f32 %v1404, %v1569
        %v1607 = vmul.f32 %v1405, %v1571
        %v1608 = vmul.f32 %v1406, %v1573
        %v1609 = vmul.f32 %v1407, %v1577
        %v1610 = vmul.f32 %v1408, %v1579
        %v1611 = vmul.f32 %v1409, %v1581
        %v1612 = vmul.f32 %v1410, %v1583
        %v1613 = vmul.f32 %v1411, %v1587
        %v1614 = vmul.f32 %v1412, %v1589
        %v1615 = vmul.f32 %v1413, %v1591
        %v1616 = vmul.f32 %v1414, %v1593
        %v1617 = vmul.f32 %v1415, %v1597
        %v1618 = vmul.f32 %v1416, %v1599
        %v1619 = vmul.f32 %v1417, %v1601
        %v1620 = vmul.f32 %v1418, %v1603
        %v1621 = vmul.f32 %v1605, %v1006
        %v1622 = vmul.f32 %v1606, %v1010
        %v1623 = vmul.f32 %v1607, %v1006
        %v1624 = vmul.f32 %v1608, %v1010
        %v1625 = vmul.f32 %v1609, %v1006
        %v1626 = vmul.f32 %v1610, %v1010
        %v1627 = vmul.f32 %v1611, %v1006
        %v1628 = vmul.f32 %v1612, %v1010
        %v1629 = vmul.f32 %v1613, %v1006
        %v1630 = vmul.f32 %v1614, %v1010
        %v1631 = vmul.f32 %v1615, %v1006
        %v1632 = vmul.f32 %v1616, %v1010
        %v1633 = vmul.f32 %v1617, %v1006
        %v1634 = vmul.f32 %v1618, %v1010
        %v1635 = vmul.f32 %v1619, %v1006
        %v1636 = vmul.f32 %v1620, %v1010
        %v1637 = vadd.f32 %v1621, %v1033
        %v1638 = vadd.f32 %v1622, %v1037
        %v1639 = vadd.f32 %v1623, %v1033
        %v1640 = vadd.f32 %v1624, %v1037
        %v1641 = vadd.f32 %v1625, %v1033
        %v1642 = vadd.f32 %v1626, %v1037
        %v1643 = vadd.f32 %v1627, %v1033
        %v1644 = vadd.f32 %v1628, %v1037
        %v1645 = vadd.f32 %v1629, %v1033
        %v1646 = vadd.f32 %v1630, %v1037
        %v1647 = vadd.f32 %v1631, %v1033
        %v1648 = vadd.f32 %v1632, %v1037
        %v1649 = vadd.f32 %v1633, %v1033
        %v1650 = vadd.f32 %v1634, %v1037
        %v1651 = vadd.f32 %v1635, %v1033
        %v1652 = vadd.f32 %v1636, %v1037
        %s1653 = scalar_lea.vmem %s284, 16 [#allocation5]
        %1654 = vst [vmem:[%s1653] sm:$0xff] %v1637
        %1655 = vst [vmem:[%s1653 + $0x8] sm:$0xff] %v1638
        %1656 = vst [vmem:[%s1653 + $0x40] sm:$0xff] %v1639
        %1657 = vst [vmem:[%s1653 + $0x48] sm:$0xff] %v1640
        %1658 = vst [vmem:[%s1653 + $0x80] sm:$0xff] %v1641
        %1659 = vst [vmem:[%s1653 + $0x88] sm:$0xff] %v1642
        %1660 = vst [vmem:[%s1653 + $0xc0] sm:$0xff] %v1643
        %1661 = vst [vmem:[%s1653 + $0xc8] sm:$0xff] %v1644
        %1662 = vst [vmem:[%s1653 + $0x100] sm:$0xff] %v1645
        %1663 = vst [vmem:[%s1653 + $0x108] sm:$0xff] %v1646
        %1664 = vst [vmem:[%s1653 + $0x140] sm:$0xff] %v1647
        %1665 = vst [vmem:[%s1653 + $0x148] sm:$0xff] %v1648
        %1666 = vst [vmem:[%s1653 + $0x180] sm:$0xff] %v1649
        %1667 = vst [vmem:[%s1653 + $0x188] sm:$0xff] %v1650
        %1668 = vst [vmem:[%s1653 + $0x1c0] sm:$0xff] %v1651
        %1669 = vst [vmem:[%s1653 + $0x1c8] sm:$0xff] %v1652
        %v1670 = vld [vmem:[#allocation2 + $0x10] sm:$0xff]
        %v1671 = vld [vmem:[#allocation2 + $0x30] sm:$0xff]
        %v1672 = vld [vmem:[#allocation2 + $0x50] sm:$0xff]
        %v1673 = vld [vmem:[#allocation2 + $0x70] sm:$0xff]
        %v1674 = vld [vmem:[#allocation2 + $0x90] sm:$0xff]
        %v1675 = vld [vmem:[#allocation2 + $0xb0] sm:$0xff]
        %v1676 = vld [vmem:[#allocation2 + $0xd0] sm:$0xff]
        %v1677 = vld [vmem:[#allocation2 + $0xf0] sm:$0xff]
        %v1678 = vld [vmem:[#allocation2 + $0x110] sm:$0xff]
        %v1679 = vld [vmem:[#allocation2 + $0x130] sm:$0xff]
        %v1680 = vld [vmem:[#allocation2 + $0x150] sm:$0xff]
        %v1681 = vld [vmem:[#allocation2 + $0x170] sm:$0xff]
        %v1682 = vld [vmem:[#allocation2 + $0x190] sm:$0xff]
        %v1683 = vld [vmem:[#allocation2 + $0x1b0] sm:$0xff]
        %v1684 = vld [vmem:[#allocation2 + $0x1d0] sm:$0xff]
        %v1685 = vld [vmem:[#allocation2 + $0x1f0] sm:$0xff]
        %v1702 = vunpack.c.l.b16 %v1670
        %v1703 = vunpack.c.h.b16 %v1670
        %v1704 = vunpack.c.l.b16 %v1671
        %v1705 = vunpack.c.h.b16 %v1671
        %v1706 = vunpack.c.l.b16 %v1672
        %v1707 = vunpack.c.h.b16 %v1672
        %v1708 = vunpack.c.l.b16 %v1673
        %v1709 = vunpack.c.h.b16 %v1673
        %v1710 = vunpack.c.l.b16 %v1674
        %v1711 = vunpack.c.h.b16 %v1674
        %v1712 = vunpack.c.l.b16 %v1675
        %v1713 = vunpack.c.h.b16 %v1675
        %v1714 = vunpack.c.l.b16 %v1676
        %v1715 = vunpack.c.h.b16 %v1676
        %v1716 = vunpack.c.l.b16 %v1677
        %v1717 = vunpack.c.h.b16 %v1677
        %v1718 = vunpack.c.l.b16 %v1678
        %v1719 = vunpack.c.h.b16 %v1678
        %v1720 = vunpack.c.l.b16 %v1679
        %v1721 = vunpack.c.h.b16 %v1679
        %v1722 = vunpack.c.l.b16 %v1680
        %v1723 = vunpack.c.h.b16 %v1680
        %v1724 = vunpack.c.l.b16 %v1681
        %v1725 = vunpack.c.h.b16 %v1681
        %v1726 = vunpack.c.l.b16 %v1682
        %v1727 = vunpack.c.h.b16 %v1682
        %v1728 = vunpack.c.l.b16 %v1683
        %v1729 = vunpack.c.h.b16 %v1683
        %v1730 = vunpack.c.l.b16 %v1684
        %v1731 = vunpack.c.h.b16 %v1684
        %v1732 = vunpack.c.l.b16 %v1685
        %v1733 = vunpack.c.h.b16 %v1685
        %v1734 = vpack.c.b16 %v1704, %v1702
        %v1735 = vpack.c.b16 %v1705, %v1703
        %v1736 = vpack.c.b16 %v1708, %v1706
        %v1737 = vpack.c.b16 %v1709, %v1707
        %v1738 = vpack.c.b16 %v1712, %v1710
        %v1739 = vpack.c.b16 %v1713, %v1711
        %v1740 = vpack.c.b16 %v1716, %v1714
        %v1741 = vpack.c.b16 %v1717, %v1715
        %v1742 = vpack.c.b16 %v1720, %v1718
        %v1743 = vpack.c.b16 %v1721, %v1719
        %v1744 = vpack.c.b16 %v1724, %v1722
        %v1745 = vpack.c.b16 %v1725, %v1723
        %v1746 = vpack.c.b16 %v1728, %v1726
        %v1747 = vpack.c.b16 %v1729, %v1727
        %v1748 = vpack.c.b16 %v1732, %v1730
        %v1749 = vpack.c.b16 %v1733, %v1731
        %1766 = vmatprep.subr.bf16.mxu0 %v1735
        %1767 = vmatpush1.bf16.msra.mxu0 %v1734
        %1768 = vmatprep.subr.bf16.mxu0 %v1737
        %1769 = vmatpush1.bf16.msra.mxu0 %v1736
        %1770 = vmatprep.subr.bf16.mxu0 %v1739
        %1771 = vmatpush1.bf16.msra.mxu0 %v1738
        %1772 = vmatprep.subr.bf16.mxu0 %v1741
        %1773 = vmatpush1.bf16.msra.mxu0 %v1740
        %1774 = vmatprep.subr.bf16.mxu0 %v1743
        %1775 = vmatpush1.bf16.msra.mxu0 %v1742
        %1776 = vmatprep.subr.bf16.mxu0 %v1745
        %1777 = vmatpush1.bf16.msra.mxu0 %v1744
        %1778 = vmatprep.subr.bf16.mxu0 %v1747
        %1779 = vmatpush1.bf16.msra.mxu0 %v1746
        %1780 = vmatprep.subr.bf16.mxu0 %v1749
        %1781 = vmatpush1.bf16.msra.mxu0 %v1748
        %1782 = vmatprep.subr.bf16.mxu0 0
        %1783 = vmatpush1.bf16.msra.mxu0 0
        %1784 = vmatprep.subr.bf16.mxu0 0
        %1785 = vmatpush1.bf16.msra.mxu0 0
        %1786 = vmatprep.subr.bf16.mxu0 0
        %1787 = vmatpush1.bf16.msra.mxu0 0
        %1788 = vmatprep.subr.bf16.mxu0 0
        %1789 = vmatpush1.bf16.msra.mxu0 0
        %1790 = vmatprep.subr.bf16.mxu0 0
        %1791 = vmatpush1.bf16.msra.mxu0 0
        %1792 = vmatprep.subr.bf16.mxu0 0
        %1793 = vmatpush1.bf16.msra.mxu0 0
        %1794 = vmatprep.subr.bf16.mxu0 0
        %1795 = vmatpush1.bf16.msra.mxu0 0
        %1796 = vmatprep.subr.bf16.mxu0 0
        %1797 = vmatpush1.bf16.msra.mxu0 0
        %1798 = vmatprep.mubr.bf16.mxu0 0
        %1799 = vmatmul.mubr.bf16.gmra.mrb[0].mxu0 %v305
        %v1800 = vpop.f32.mrb[0].mxu0
        %v1801 = vadd.f32 0.0, %v1800
        %v1802 = vpop.f32.mrb[0].mxu0
        %v1803 = vadd.f32 0.0, %v1802
        %v1804 = vpop.f32.mrb[0].mxu0
        %v1805 = vadd.f32 0.0, %v1804
        %v1806 = vpop.f32.mrb[0].mxu0
        %v1807 = vadd.f32 0.0, %v1806
        %1808 = vmatprep.mubr.bf16.mxu0 0
        %1809 = vmatmul.mubr.bf16.gmra.mrb[0].mxu0 %v306
        %v1810 = vpop.f32.mrb[0].mxu0
        %v1811 = vadd.f32 0.0, %v1810
        %v1812 = vpop.f32.mrb[0].mxu0
        %v1813 = vadd.f32 0.0, %v1812
        %v1814 = vpop.f32.mrb[0].mxu0
        %v1815 = vadd.f32 0.0, %v1814
        %v1816 = vpop.f32.mrb[0].mxu0
        %v1817 = vadd.f32 0.0, %v1816
        %1818 = vmatprep.mubr.bf16.mxu0 0
        %1819 = vmatmul.mubr.bf16.gmra.mrb[0].mxu0 %v307
        %v1820 = vpop.f32.mrb[0].mxu0
        %v1821 = vadd.f32 0.0, %v1820
        %v1822 = vpop.f32.mrb[0].mxu0
        %v1823 = vadd.f32 0.0, %v1822
        %v1824 = vpop.f32.mrb[0].mxu0
        %v1825 = vadd.f32 0.0, %v1824
        %v1826 = vpop.f32.mrb[0].mxu0
        %v1827 = vadd.f32 0.0, %v1826
        %1828 = vmatprep.mubr.bf16.mxu0 0
        %1829 = vmatmul.mubr.bf16.gmra.mrb[0].mxu0 %v308
        %v1830 = vpop.f32.mrb[0].mxu0
        %v1831 = vadd.f32 0.0, %v1830
        %v1832 = vpop.f32.mrb[0].mxu0
        %v1833 = vadd.f32 0.0, %v1832
        %v1834 = vpop.f32.mrb[0].mxu0
        %v1835 = vadd.f32 0.0, %v1834
        %v1836 = vpop.f32.mrb[0].mxu0
        %v1837 = vadd.f32 0.0, %v1836
        %1838 = vdwg.mxu0
        %v1839 = vpack.c.bf16 %v1805, %v1801
        %v1840 = vpack.c.bf16 %v1807, %v1803
        %v1841 = vpack.c.bf16 %v1815, %v1811
        %v1842 = vpack.c.bf16 %v1817, %v1813
        %v1843 = vpack.c.bf16 %v1825, %v1821
        %v1844 = vpack.c.bf16 %v1827, %v1823
        %v1845 = vpack.c.bf16 %v1835, %v1831
        %v1846 = vpack.c.bf16 %v1837, %v1833
        %1847 = vmatprep.subr.bf16.mxu0 0
        %1848 = vmatpush1.bf16.msra.mxu0 %v585
        %1849 = vmatprep.subr.bf16.mxu0 0
        %1850 = vmatpush1.bf16.msra.mxu0 %v586
        %1851 = vmatprep.subr.bf16.mxu0 0
        %1852 = vmatpush1.bf16.msra.mxu0 %v587
        %1853 = vmatprep.subr.bf16.mxu0 0
        %1854 = vmatpush1.bf16.msra.mxu0 %v588
        %1855 = vmatprep.subr.bf16.mxu0 0
        %1856 = vmatpush1.bf16.msra.mxu0 %v589
        %1857 = vmatprep.subr.bf16.mxu0 0
        %1858 = vmatpush1.bf16.msra.mxu0 %v590
        %1859 = vmatprep.subr.bf16.mxu0 0
        %1860 = vmatpush1.bf16.msra.mxu0 %v591
        %1861 = vmatprep.subr.bf16.mxu0 0
        %1862 = vmatpush1.bf16.msra.mxu0 %v592
        %1863 = vmatprep.subr.bf16.mxu0 0
        %1864 = vmatpush1.bf16.msra.mxu0 %v593
        %1865 = vmatprep.subr.bf16.mxu0 0
        %1866 = vmatpush1.bf16.msra.mxu0 %v594
        %1867 = vmatprep.subr.bf16.mxu0 0
        %1868 = vmatpush1.bf16.msra.mxu0 %v595
        %1869 = vmatprep.subr.bf16.mxu0 0
        %1870 = vmatpush1.bf16.msra.mxu0 %v596
        %1871 = vmatprep.subr.bf16.mxu0 0
        %1872 = vmatpush1.bf16.msra.mxu0 %v597
        %1873 = vmatprep.subr.bf16.mxu0 0
        %1874 = vmatpush1.bf16.msra.mxu0 %v598
        %1875 = vmatprep.subr.bf16.mxu0 0
        %1876 = vmatpush1.bf16.msra.mxu0 %v599
        %1877 = vmatprep.subr.bf16.mxu0 0
        %1878 = vmatpush1.bf16.msra.mxu0 %v600
        %1879 = vmatprep.mubr.bf16.mxu0 %v1840
        %1880 = vmatmul.mubr.bf16.gmra.mrb[0].mxu0 %v1839
        %v1881 = vpop.f32.mrb[0].mxu0
        %v1882 = vadd.f32 0.0, %v1881
        %v1883 = vpop.f32.mrb[0].mxu0
        %v1884 = vpop.f32.mrb[0].mxu0
        %v1885 = vadd.f32 0.0, %v1884
        %v1886 = vpop.f32.mrb[0].mxu0
        %1887 = vmatprep.mubr.bf16.mxu0 %v1842
        %1888 = vmatmul.mubr.bf16.gmra.mrb[0].mxu0 %v1841
        %v1889 = vpop.f32.mrb[0].mxu0
        %v1890 = vadd.f32 0.0, %v1889
        %v1891 = vpop.f32.mrb[0].mxu0
        %v1892 = vpop.f32.mrb[0].mxu0
        %v1893 = vadd.f32 0.0, %v1892
        %v1894 = vpop.f32.mrb[0].mxu0
        %1895 = vmatprep.mubr.bf16.mxu0 %v1844
        %1896 = vmatmul.mubr.bf16.gmra.mrb[0].mxu0 %v1843
        %v1897 = vpop.f32.mrb[0].mxu0
        %v1898 = vadd.f32 0.0, %v1897
        %v1899 = vpop.f32.mrb[0].mxu0
        %v1900 = vpop.f32.mrb[0].mxu0
        %v1901 = vadd.f32 0.0, %v1900
        %v1902 = vpop.f32.mrb[0].mxu0
        %1903 = vmatprep.mubr.bf16.mxu0 %v1846
        %1904 = vmatmul.mubr.bf16.gmra.mrb[0].mxu0 %v1845
        %v1905 = vpop.f32.mrb[0].mxu0
        %v1906 = vadd.f32 0.0, %v1905
        %v1907 = vpop.f32.mrb[0].mxu0
        %v1908 = vpop.f32.mrb[0].mxu0
        %v1909 = vadd.f32 0.0, %v1908
        %v1910 = vpop.f32.mrb[0].mxu0
        %1911 = vdwg.mxu0
        %v1912 = vpack.c.bf16 %v1885, %v1882
        %v1913 = vpack.c.bf16 %v1893, %v1890
        %v1914 = vpack.c.bf16 %v1901, %v1898
        %v1915 = vpack.c.bf16 %v1909, %v1906
        %v1917 = vsel %vm691, %v1912, 0
        %v1920 = vsel %vm691, %v1913, 0
        %v1923 = vsel %vm691, %v1914, 0
        %v1926 = vsel %vm691, %v1915, 0
        %1928 = vmatprep.subr.bf16.mxu0 %v709
        %1929 = vmatpush1.bf16.msra.mxu0 %v706
        %1930 = vmatprep.subr.bf16.mxu0 0
        %1931 = vmatpush1.bf16.msra.mxu0 0
        %1932 = vmatprep.subr.bf16.mxu0 0
        %1933 = vmatpush1.bf16.msra.mxu0 0
        %1934 = vmatprep.subr.bf16.mxu0 0
        %1935 = vmatpush1.bf16.msra.mxu0 0
        %1936 = vmatprep.subr.bf16.mxu0 0
        %1937 = vmatpush1.bf16.msra.mxu0 0
        %1938 = vmatprep.subr.bf16.mxu0 0
        %1939 = vmatpush1.bf16.msra.mxu0 0
        %1940 = vmatprep.subr.bf16.mxu0 0
        %1941 = vmatpush1.bf16.msra.mxu0 0
        %1942 = vmatprep.subr.bf16.mxu0 0
        %1943 = vmatpush1.bf16.msra.mxu0 0
        %1944 = vmatprep.subr.bf16.mxu0 0
        %1945 = vmatpush1.bf16.msra.mxu0 0
        %1946 = vmatprep.subr.bf16.mxu0 0
        %1947 = vmatpush1.bf16.msra.mxu0 0
        %1948 = vmatprep.subr.bf16.mxu0 0
        %1949 = vmatpush1.bf16.msra.mxu0 0
        %1950 = vmatprep.subr.bf16.mxu0 0
        %1951 = vmatpush1.bf16.msra.mxu0 0
        %1952 = vmatprep.subr.bf16.mxu0 0
        %1953 = vmatpush1.bf16.msra.mxu0 0
        %1954 = vmatprep.subr.bf16.mxu0 0
        %1955 = vmatpush1.bf16.msra.mxu0 0
        %1956 = vmatprep.subr.bf16.mxu0 0
        %1957 = vmatpush1.bf16.msra.mxu0 0
        %1958 = vmatprep.subr.bf16.mxu0 0
        %1959 = vmatpush1.bf16.msra.mxu0 0
        %1960 = vmatprep.mubr.bf16.mxu0 0
        %1961 = vmatmul.mubr.bf16.gmra.mrb[0].mxu0 %v1917
        %v1962 = vpop.f32.mrb[0].mxu0
        %v1963 = vadd.f32 0.0, %v1962
        %v1964 = vpop.f32.mrb[0].mxu0
        %v1965 = vadd.f32 0.0, %v1964
        %v1966 = vpop.f32.mrb[0].mxu0
        %v1967 = vadd.f32 0.0, %v1966
        %v1968 = vpop.f32.mrb[0].mxu0
        %v1969 = vadd.f32 0.0, %v1968
        %1970 = vmatprep.mubr.bf16.mxu0 0
        %1971 = vmatmul.mubr.bf16.gmra.mrb[0].mxu0 %v1920
        %v1972 = vpop.f32.mrb[0].mxu0
        %v1973 = vadd.f32 0.0, %v1972
        %v1974 = vpop.f32.mrb[0].mxu0
        %v1975 = vadd.f32 0.0, %v1974
        %v1976 = vpop.f32.mrb[0].mxu0
        %v1977 = vadd.f32 0.0, %v1976
        %v1978 = vpop.f32.mrb[0].mxu0
        %v1979 = vadd.f32 0.0, %v1978
        %1980 = vmatprep.mubr.bf16.mxu0 0
        %1981 = vmatmul.mubr.bf16.gmra.mrb[0].mxu0 %v1923
        %v1982 = vpop.f32.mrb[0].mxu0
        %v1983 = vadd.f32 0.0, %v1982
        %v1984 = vpop.f32.mrb[0].mxu0
        %v1985 = vadd.f32 0.0, %v1984
        %v1986 = vpop.f32.mrb[0].mxu0
        %v1987 = vadd.f32 0.0, %v1986
        %v1988 = vpop.f32.mrb[0].mxu0
        %v1989 = vadd.f32 0.0, %v1988
        %1990 = vmatprep.mubr.bf16.mxu0 0
        %1991 = vmatmul.mubr.bf16.gmra.mrb[0].mxu0 %v1926
        %v1992 = vpop.f32.mrb[0].mxu0
        %v1993 = vadd.f32 0.0, %v1992
        %v1994 = vpop.f32.mrb[0].mxu0
        %v1995 = vadd.f32 0.0, %v1994
        %v1996 = vpop.f32.mrb[0].mxu0
        %v1997 = vadd.f32 0.0, %v1996
        %v1998 = vpop.f32.mrb[0].mxu0
        %v1999 = vadd.f32 0.0, %v1998
        %2000 = vdwg.mxu0
        %v2001 = vsub.f32 %v1801, %v1963
        %v2002 = vsub.f32 %v1803, %v1965
        %v2003 = vsub.f32 %v1805, %v1967
        %v2004 = vsub.f32 %v1807, %v1969
        %v2005 = vsub.f32 %v1811, %v1973
        %v2006 = vsub.f32 %v1813, %v1975
        %v2007 = vsub.f32 %v1815, %v1977
        %v2008 = vsub.f32 %v1817, %v1979
        %v2009 = vsub.f32 %v1821, %v1983
        %v2010 = vsub.f32 %v1823, %v1985
        %v2011 = vsub.f32 %v1825, %v1987
        %v2012 = vsub.f32 %v1827, %v1989
        %v2013 = vsub.f32 %v1831, %v1993
        %v2014 = vsub.f32 %v1833, %v1995
        %v2015 = vsub.f32 %v1835, %v1997
        %v2016 = vsub.f32 %v1837, %v1999
        %v2017 = vmul.f32 %v2001, %v2001
        %v2018 = vmul.f32 %v2002, %v2002
        %v2019 = vmul.f32 %v2003, %v2003
        %v2020 = vmul.f32 %v2004, %v2004
        %v2021 = vmul.f32 %v2005, %v2005
        %v2022 = vmul.f32 %v2006, %v2006
        %v2023 = vmul.f32 %v2007, %v2007
        %v2024 = vmul.f32 %v2008, %v2008
        %v2025 = vmul.f32 %v2009, %v2009
        %v2026 = vmul.f32 %v2010, %v2010
        %v2027 = vmul.f32 %v2011, %v2011
        %v2028 = vmul.f32 %v2012, %v2012
        %v2029 = vmul.f32 %v2013, %v2013
        %v2030 = vmul.f32 %v2014, %v2014
        %v2031 = vmul.f32 %v2015, %v2015
        %v2032 = vmul.f32 %v2016, %v2016
        %v2033 = vpack.c.bf16 %v2019, %v2017
        %v2034 = vpack.c.bf16 %v2020, %v2018
        %v2035 = vpack.c.bf16 %v2023, %v2021
        %v2036 = vpack.c.bf16 %v2024, %v2022
        %v2037 = vpack.c.bf16 %v2027, %v2025
        %v2038 = vpack.c.bf16 %v2028, %v2026
        %v2039 = vpack.c.bf16 %v2031, %v2029
        %v2040 = vpack.c.bf16 %v2032, %v2030
        %2041 = vmatprep.subr.bf16.mxu0 0
        %2042 = vmatpush1.bf16.msra.mxu0 %v585
        %2043 = vmatprep.subr.bf16.mxu0 0
        %2044 = vmatpush1.bf16.msra.mxu0 %v586
        %2045 = vmatprep.subr.bf16.mxu0 0
        %2046 = vmatpush1.bf16.msra.mxu0 %v587
        %2047 = vmatprep.subr.bf16.mxu0 0
        %2048 = vmatpush1.bf16.msra.mxu0 %v588
        %2049 = vmatprep.subr.bf16.mxu0 0
        %2050 = vmatpush1.bf16.msra.mxu0 %v589
        %2051 = vmatprep.subr.bf16.mxu0 0
        %2052 = vmatpush1.bf16.msra.mxu0 %v590
        %2053 = vmatprep.subr.bf16.mxu0 0
        %2054 = vmatpush1.bf16.msra.mxu0 %v591
        %2055 = vmatprep.subr.bf16.mxu0 0
        %2056 = vmatpush1.bf16.msra.mxu0 %v592
        %2057 = vmatprep.subr.bf16.mxu0 0
        %2058 = vmatpush1.bf16.msra.mxu0 %v593
        %2059 = vmatprep.subr.bf16.mxu0 0
        %2060 = vmatpush1.bf16.msra.mxu0 %v594
        %2061 = vmatprep.subr.bf16.mxu0 0
        %2062 = vmatpush1.bf16.msra.mxu0 %v595
        %2063 = vmatprep.subr.bf16.mxu0 0
        %2064 = vmatpush1.bf16.msra.mxu0 %v596
        %2065 = vmatprep.subr.bf16.mxu0 0
        %2066 = vmatpush1.bf16.msra.mxu0 %v597
        %2067 = vmatprep.subr.bf16.mxu0 0
        %2068 = vmatpush1.bf16.msra.mxu0 %v598
        %2069 = vmatprep.subr.bf16.mxu0 0
        %2070 = vmatpush1.bf16.msra.mxu0 %v599
        %2071 = vmatprep.subr.bf16.mxu0 0
        %2072 = vmatpush1.bf16.msra.mxu0 %v600
        %2073 = vmatprep.mubr.bf16.mxu0 %v2034
        %2074 = vmatmul.mubr.bf16.gmra.mrb[0].mxu0 %v2033
        %v2075 = vpop.f32.mrb[0].mxu0
        %v2076 = vadd.f32 1e-05, %v2075
        %v2077 = vpop.f32.mrb[0].mxu0
        %v2078 = vpop.f32.mrb[0].mxu0
        %v2079 = vadd.f32 1e-05, %v2078
        %v2080 = vpop.f32.mrb[0].mxu0
        %2081 = vmatprep.mubr.bf16.mxu0 %v2036
        %2082 = vmatmul.mubr.bf16.gmra.mrb[0].mxu0 %v2035
        %v2083 = vpop.f32.mrb[0].mxu0
        %v2084 = vadd.f32 1e-05, %v2083
        %v2085 = vpop.f32.mrb[0].mxu0
        %v2086 = vpop.f32.mrb[0].mxu0
        %v2087 = vadd.f32 1e-05, %v2086
        %v2088 = vpop.f32.mrb[0].mxu0
        %2089 = vmatprep.mubr.bf16.mxu0 %v2038
        %2090 = vmatmul.mubr.bf16.gmra.mrb[0].mxu0 %v2037
        %v2091 = vpop.f32.mrb[0].mxu0
        %v2092 = vadd.f32 1e-05, %v2091
        %v2093 = vpop.f32.mrb[0].mxu0
        %v2094 = vpop.f32.mrb[0].mxu0
        %v2095 = vadd.f32 1e-05, %v2094
        %v2096 = vpop.f32.mrb[0].mxu0
        %2097 = vmatprep.mubr.bf16.mxu0 %v2040
        %2098 = vmatmul.mubr.bf16.gmra.mrb[0].mxu0 %v2039
        %v2099 = vpop.f32.mrb[0].mxu0
        %v2100 = vadd.f32 1e-05, %v2099
        %v2101 = vpop.f32.mrb[0].mxu0
        %v2102 = vpop.f32.mrb[0].mxu0
        %v2103 = vadd.f32 1e-05, %v2102
        %v2104 = vpop.f32.mrb[0].mxu0
        %2105 = vdwg.mxu0
        %v2106 = vrsqrt.pop %v2076
        %v2107 = vrsqrt.pop %v2079
        %v2108 = vrsqrt.pop %v2084
        %v2109 = vrsqrt.pop %v2087
        %v2110 = vrsqrt.pop %v2092
        %v2111 = vrsqrt.pop %v2095
        %v2112 = vrsqrt.pop %v2100
        %v2113 = vrsqrt.pop %v2103
        %v2114 = vpack.c.bf16 %v2107, %v2106
        %v2115 = vpack.c.bf16 %v2109, %v2108
        %v2116 = vpack.c.bf16 %v2111, %v2110
        %v2117 = vpack.c.bf16 %v2113, %v2112
        %v2119 = vsel %vm691, %v2114, 0
        %v2122 = vsel %vm691, %v2115, 0
        %v2125 = vsel %vm691, %v2116, 0
        %v2128 = vsel %vm691, %v2117, 0
        %2130 = vmatprep.subr.bf16.mxu0 %v709
        %2131 = vmatpush1.bf16.msra.mxu0 %v706
        %2132 = vmatprep.subr.bf16.mxu0 0
        %2133 = vmatpush1.bf16.msra.mxu0 0
        %2134 = vmatprep.subr.bf16.mxu0 0
        %2135 = vmatpush1.bf16.msra.mxu0 0
        %2136 = vmatprep.subr.bf16.mxu0 0
        %2137 = vmatpush1.bf16.msra.mxu0 0
        %2138 = vmatprep.subr.bf16.mxu0 0
        %2139 = vmatpush1.bf16.msra.mxu0 0
        %2140 = vmatprep.subr.bf16.mxu0 0
        %2141 = vmatpush1.bf16.msra.mxu0 0
        %2142 = vmatprep.subr.bf16.mxu0 0
        %2143 = vmatpush1.bf16.msra.mxu0 0
        %2144 = vmatprep.subr.bf16.mxu0 0
        %2145 = vmatpush1.bf16.msra.mxu0 0
        %2146 = vmatprep.subr.bf16.mxu0 0
        %2147 = vmatpush1.bf16.msra.mxu0 0
        %2148 = vmatprep.subr.bf16.mxu0 0
        %2149 = vmatpush1.bf16.msra.mxu0 0
        %2150 = vmatprep.subr.bf16.mxu0 0
        %2151 = vmatpush1.bf16.msra.mxu0 0
        %2152 = vmatprep.subr.bf16.mxu0 0
        %2153 = vmatpush1.bf16.msra.mxu0 0
        %2154 = vmatprep.subr.bf16.mxu0 0
        %2155 = vmatpush1.bf16.msra.mxu0 0
        %2156 = vmatprep.subr.bf16.mxu0 0
        %2157 = vmatpush1.bf16.msra.mxu0 0
        %2158 = vmatprep.subr.bf16.mxu0 0
        %2159 = vmatpush1.bf16.msra.mxu0 0
        %2160 = vmatprep.subr.bf16.mxu0 0
        %2161 = vmatpush1.bf16.msra.mxu0 0
        %2162 = vmatprep.mubr.bf16.mxu0 0
        %2163 = vmatmul.mubr.bf16.gmra.mrb[0].mxu0 %v2119
        %v2164 = vpop.f32.mrb[0].mxu0
        %v2165 = vadd.f32 0.0, %v2164
        %v2166 = vpop.f32.mrb[0].mxu0
        %v2167 = vadd.f32 0.0, %v2166
        %v2168 = vpop.f32.mrb[0].mxu0
        %v2169 = vadd.f32 0.0, %v2168
        %v2170 = vpop.f32.mrb[0].mxu0
        %v2171 = vadd.f32 0.0, %v2170
        %2172 = vmatprep.mubr.bf16.mxu0 0
        %2173 = vmatmul.mubr.bf16.gmra.mrb[0].mxu0 %v2122
        %v2174 = vpop.f32.mrb[0].mxu0
        %v2175 = vadd.f32 0.0, %v2174
        %v2176 = vpop.f32.mrb[0].mxu0
        %v2177 = vadd.f32 0.0, %v2176
        %v2178 = vpop.f32.mrb[0].mxu0
        %v2179 = vadd.f32 0.0, %v2178
        %v2180 = vpop.f32.mrb[0].mxu0
        %v2181 = vadd.f32 0.0, %v2180
        %2182 = vmatprep.mubr.bf16.mxu0 0
        %2183 = vmatmul.mubr.bf16.gmra.mrb[0].mxu0 %v2125
        %v2184 = vpop.f32.mrb[0].mxu0
        %v2185 = vadd.f32 0.0, %v2184
        %v2186 = vpop.f32.mrb[0].mxu0
        %v2187 = vadd.f32 0.0, %v2186
        %v2188 = vpop.f32.mrb[0].mxu0
        %v2189 = vadd.f32 0.0, %v2188
        %v2190 = vpop.f32.mrb[0].mxu0
        %v2191 = vadd.f32 0.0, %v2190
        %2192 = vmatprep.mubr.bf16.mxu0 0
        %2193 = vmatmul.mubr.bf16.gmra.mrb[0].mxu0 %v2128
        %v2194 = vpop.f32.mrb[0].mxu0
        %v2195 = vadd.f32 0.0, %v2194
        %v2196 = vpop.f32.mrb[0].mxu0
        %v2197 = vadd.f32 0.0, %v2196
        %v2198 = vpop.f32.mrb[0].mxu0
        %v2199 = vadd.f32 0.0, %v2198
        %v2200 = vpop.f32.mrb[0].mxu0
        %v2201 = vadd.f32 0.0, %v2200
        %2202 = vdwg.mxu0
        %v2203 = vmul.f32 %v2001, %v2165
        %v2204 = vmul.f32 %v2002, %v2167
        %v2205 = vmul.f32 %v2003, %v2169
        %v2206 = vmul.f32 %v2004, %v2171
        %v2207 = vmul.f32 %v2005, %v2175
        %v2208 = vmul.f32 %v2006, %v2177
        %v2209 = vmul.f32 %v2007, %v2179
        %v2210 = vmul.f32 %v2008, %v2181
        %v2211 = vmul.f32 %v2009, %v2185
        %v2212 = vmul.f32 %v2010, %v2187
        %v2213 = vmul.f32 %v2011, %v2189
        %v2214 = vmul.f32 %v2012, %v2191
        %v2215 = vmul.f32 %v2013, %v2195
        %v2216 = vmul.f32 %v2014, %v2197
        %v2217 = vmul.f32 %v2015, %v2199
        %v2218 = vmul.f32 %v2016, %v2201
        %v2219 = vmul.f32 %v2203, %v1006
        %v2220 = vmul.f32 %v2204, %v1010
        %v2221 = vmul.f32 %v2205, %v1006
        %v2222 = vmul.f32 %v2206, %v1010
        %v2223 = vmul.f32 %v2207, %v1006
        %v2224 = vmul.f32 %v2208, %v1010
        %v2225 = vmul.f32 %v2209, %v1006
        %v2226 = vmul.f32 %v2210, %v1010
        %v2227 = vmul.f32 %v2211, %v1006
        %v2228 = vmul.f32 %v2212, %v1010
        %v2229 = vmul.f32 %v2213, %v1006
        %v2230 = vmul.f32 %v2214, %v1010
        %v2231 = vmul.f32 %v2215, %v1006
        %v2232 = vmul.f32 %v2216, %v1010
        %v2233 = vmul.f32 %v2217, %v1006
        %v2234 = vmul.f32 %v2218, %v1010
        %v2235 = vadd.f32 %v2219, %v1033
        %v2236 = vadd.f32 %v2220, %v1037
        %v2237 = vadd.f32 %v2221, %v1033
        %v2238 = vadd.f32 %v2222, %v1037
        %v2239 = vadd.f32 %v2223, %v1033
        %v2240 = vadd.f32 %v2224, %v1037
        %v2241 = vadd.f32 %v2225, %v1033
        %v2242 = vadd.f32 %v2226, %v1037
        %v2243 = vadd.f32 %v2227, %v1033
        %v2244 = vadd.f32 %v2228, %v1037
        %v2245 = vadd.f32 %v2229, %v1033
        %v2246 = vadd.f32 %v2230, %v1037
        %v2247 = vadd.f32 %v2231, %v1033
        %v2248 = vadd.f32 %v2232, %v1037
        %v2249 = vadd.f32 %v2233, %v1033
        %v2250 = vadd.f32 %v2234, %v1037
        %s2251 = scalar_lea.vmem %s284, 32 [#allocation5]
        %2252 = vst [vmem:[%s2251] sm:$0xff] %v2235
        %2253 = vst [vmem:[%s2251 + $0x8] sm:$0xff] %v2236
        %2254 = vst [vmem:[%s2251 + $0x40] sm:$0xff] %v2237
        %2255 = vst [vmem:[%s2251 + $0x48] sm:$0xff] %v2238
        %2256 = vst [vmem:[%s2251 + $0x80] sm:$0xff] %v2239
        %2257 = vst [vmem:[%s2251 + $0x88] sm:$0xff] %v2240
        %2258 = vst [vmem:[%s2251 + $0xc0] sm:$0xff] %v2241
        %2259 = vst [vmem:[%s2251 + $0xc8] sm:$0xff] %v2242
        %2260 = vst [vmem:[%s2251 + $0x100] sm:$0xff] %v2243
        %2261 = vst [vmem:[%s2251 + $0x108] sm:$0xff] %v2244
        %2262 = vst [vmem:[%s2251 + $0x140] sm:$0xff] %v2245
        %2263 = vst [vmem:[%s2251 + $0x148] sm:$0xff] %v2246
        %2264 = vst [vmem:[%s2251 + $0x180] sm:$0xff] %v2247
        %2265 = vst [vmem:[%s2251 + $0x188] sm:$0xff] %v2248
        %2266 = vst [vmem:[%s2251 + $0x1c0] sm:$0xff] %v2249
        %2267 = vst [vmem:[%s2251 + $0x1c8] sm:$0xff] %v2250
        %v2268 = vld [vmem:[#allocation2 + $0x18] sm:$0xff]
        %v2269 = vld [vmem:[#allocation2 + $0x38] sm:$0xff]
        %v2270 = vld [vmem:[#allocation2 + $0x58] sm:$0xff]
        %v2271 = vld [vmem:[#allocation2 + $0x78] sm:$0xff]
        %v2272 = vld [vmem:[#allocation2 + $0x98] sm:$0xff]
        %v2273 = vld [vmem:[#allocation2 + $0xb8] sm:$0xff]
        %v2274 = vld [vmem:[#allocation2 + $0xd8] sm:$0xff]
        %v2275 = vld [vmem:[#allocation2 + $0xf8] sm:$0xff]
        %v2276 = vld [vmem:[#allocation2 + $0x118] sm:$0xff]
        %v2277 = vld [vmem:[#allocation2 + $0x138] sm:$0xff]
        %v2278 = vld [vmem:[#allocation2 + $0x158] sm:$0xff]
        %v2279 = vld [vmem:[#allocation2 + $0x178] sm:$0xff]
        %v2280 = vld [vmem:[#allocation2 + $0x198] sm:$0xff]
        %v2281 = vld [vmem:[#allocation2 + $0x1b8] sm:$0xff]
        %v2282 = vld [vmem:[#allocation2 + $0x1d8] sm:$0xff]
        %v2283 = vld [vmem:[#allocation2 + $0x1f8] sm:$0xff]
        %v2300 = vunpack.c.l.b16 %v2268
        %v2301 = vunpack.c.h.b16 %v2268
        %v2302 = vunpack.c.l.b16 %v2269
        %v2303 = vunpack.c.h.b16 %v2269
        %v2304 = vunpack.c.l.b16 %v2270
        %v2305 = vunpack.c.h.b16 %v2270
        %v2306 = vunpack.c.l.b16 %v2271
        %v2307 = vunpack.c.h.b16 %v2271
        %v2308 = vunpack.c.l.b16 %v2272
        %v2309 = vunpack.c.h.b16 %v2272
        %v2310 = vunpack.c.l.b16 %v2273
        %v2311 = vunpack.c.h.b16 %v2273
        %v2312 = vunpack.c.l.b16 %v2274
        %v2313 = vunpack.c.h.b16 %v2274
        %v2314 = vunpack.c.l.b16 %v2275
        %v2315 = vunpack.c.h.b16 %v2275
        %v2316 = vunpack.c.l.b16 %v2276
        %v2317 = vunpack.c.h.b16 %v2276
        %v2318 = vunpack.c.l.b16 %v2277
        %v2319 = vunpack.c.h.b16 %v2277
        %v2320 = vunpack.c.l.b16 %v2278
        %v2321 = vunpack.c.h.b16 %v2278
        %v2322 = vunpack.c.l.b16 %v2279
        %v2323 = vunpack.c.h.b16 %v2279
        %v2324 = vunpack.c.l.b16 %v2280
        %v2325 = vunpack.c.h.b16 %v2280
        %v2326 = vunpack.c.l.b16 %v2281
        %v2327 = vunpack.c.h.b16 %v2281
        %v2328 = vunpack.c.l.b16 %v2282
        %v2329 = vunpack.c.h.b16 %v2282
        %v2330 = vunpack.c.l.b16 %v2283
        %v2331 = vunpack.c.h.b16 %v2283
        %v2332 = vpack.c.b16 %v2302, %v2300
        %v2333 = vpack.c.b16 %v2303, %v2301
        %v2334 = vpack.c.b16 %v2306, %v2304
        %v2335 = vpack.c.b16 %v2307, %v2305
        %v2336 = vpack.c.b16 %v2310, %v2308
        %v2337 = vpack.c.b16 %v2311, %v2309
        %v2338 = vpack.c.b16 %v2314, %v2312
        %v2339 = vpack.c.b16 %v2315, %v2313
        %v2340 = vpack.c.b16 %v2318, %v2316
        %v2341 = vpack.c.b16 %v2319, %v2317
        %v2342 = vpack.c.b16 %v2322, %v2320
        %v2343 = vpack.c.b16 %v2323, %v2321
        %v2344 = vpack.c.b16 %v2326, %v2324
        %v2345 = vpack.c.b16 %v2327, %v2325
        %v2346 = vpack.c.b16 %v2330, %v2328
        %v2347 = vpack.c.b16 %v2331, %v2329
        %2364 = vmatprep.subr.bf16.mxu0 %v2333
        %2365 = vmatpush1.bf16.msra.mxu0 %v2332
        %2366 = vmatprep.subr.bf16.mxu0 %v2335
        %2367 = vmatpush1.bf16.msra.mxu0 %v2334
        %2368 = vmatprep.subr.bf16.mxu0 %v2337
        %2369 = vmatpush1.bf16.msra.mxu0 %v2336
        %2370 = vmatprep.subr.bf16.mxu0 %v2339
        %2371 = vmatpush1.bf16.msra.mxu0 %v2338
        %2372 = vmatprep.subr.bf16.mxu0 %v2341
        %2373 = vmatpush1.bf16.msra.mxu0 %v2340
        %2374 = vmatprep.subr.bf16.mxu0 %v2343
        %2375 = vmatpush1.bf16.msra.mxu0 %v2342
        %2376 = vmatprep.subr.bf16.mxu0 %v2345
        %2377 = vmatpush1.bf16.msra.mxu0 %v2344
        %2378 = vmatprep.subr.bf16.mxu0 %v2347
        %2379 = vmatpush1.bf16.msra.mxu0 %v2346
        %2380 = vmatprep.subr.bf16.mxu0 0
        %2381 = vmatpush1.bf16.msra.mxu0 0
        %2382 = vmatprep.subr.bf16.mxu0 0
        %2383 = vmatpush1.bf16.msra.mxu0 0
        %2384 = vmatprep.subr.bf16.mxu0 0
        %2385 = vmatpush1.bf16.msra.mxu0 0
        %2386 = vmatprep.subr.bf16.mxu0 0
        %2387 = vmatpush1.bf16.msra.mxu0 0
        %2388 = vmatprep.subr.bf16.mxu0 0
        %2389 = vmatpush1.bf16.msra.mxu0 0
        %2390 = vmatprep.subr.bf16.mxu0 0
        %2391 = vmatpush1.bf16.msra.mxu0 0
        %2392 = vmatprep.subr.bf16.mxu0 0
        %2393 = vmatpush1.bf16.msra.mxu0 0
        %2394 = vmatprep.subr.bf16.mxu0 0
        %2395 = vmatpush1.bf16.msra.mxu0 0
        %2396 = vmatprep.mubr.bf16.mxu0 0
        %2397 = vmatmul.mubr.bf16.gmra.mrb[0].mxu0 %v305
        %v2398 = vpop.f32.mrb[0].mxu0
        %v2399 = vadd.f32 0.0, %v2398
        %v2400 = vpop.f32.mrb[0].mxu0
        %v2401 = vadd.f32 0.0, %v2400
        %v2402 = vpop.f32.mrb[0].mxu0
        %v2403 = vadd.f32 0.0, %v2402
        %v2404 = vpop.f32.mrb[0].mxu0
        %v2405 = vadd.f32 0.0, %v2404
        %2406 = vmatprep.mubr.bf16.mxu0 0
        %2407 = vmatmul.mubr.bf16.gmra.mrb[0].mxu0 %v306
        %v2408 = vpop.f32.mrb[0].mxu0
        %v2409 = vadd.f32 0.0, %v2408
        %v2410 = vpop.f32.mrb[0].mxu0
        %v2411 = vadd.f32 0.0, %v2410
        %v2412 = vpop.f32.mrb[0].mxu0
        %v2413 = vadd.f32 0.0, %v2412
        %v2414 = vpop.f32.mrb[0].mxu0
        %v2415 = vadd.f32 0.0, %v2414
        %2416 = vmatprep.mubr.bf16.mxu0 0
        %2417 = vmatmul.mubr.bf16.gmra.mrb[0].mxu0 %v307
        %v2418 = vpop.f32.mrb[0].mxu0
        %v2419 = vadd.f32 0.0, %v2418
        %v2420 = vpop.f32.mrb[0].mxu0
        %v2421 = vadd.f32 0.0, %v2420
        %v2422 = vpop.f32.mrb[0].mxu0
        %v2423 = vadd.f32 0.0, %v2422
        %v2424 = vpop.f32.mrb[0].mxu0
        %v2425 = vadd.f32 0.0, %v2424
        %2426 = vmatprep.mubr.bf16.mxu0 0
        %2427 = vmatmul.mubr.bf16.gmra.mrb[0].mxu0 %v308
        %v2428 = vpop.f32.mrb[0].mxu0
        %v2429 = vadd.f32 0.0, %v2428
        %v2430 = vpop.f32.mrb[0].mxu0
        %v2431 = vadd.f32 0.0, %v2430
        %v2432 = vpop.f32.mrb[0].mxu0
        %v2433 = vadd.f32 0.0, %v2432
        %v2434 = vpop.f32.mrb[0].mxu0
        %v2435 = vadd.f32 0.0, %v2434
        %2436 = vdwg.mxu0
        %v2437 = vpack.c.bf16 %v2403, %v2399
        %v2438 = vpack.c.bf16 %v2405, %v2401
        %v2439 = vpack.c.bf16 %v2413, %v2409
        %v2440 = vpack.c.bf16 %v2415, %v2411
        %v2441 = vpack.c.bf16 %v2423, %v2419
        %v2442 = vpack.c.bf16 %v2425, %v2421
        %v2443 = vpack.c.bf16 %v2433, %v2429
        %v2444 = vpack.c.bf16 %v2435, %v2431
        %2445 = vmatprep.subr.bf16.mxu0 0
        %2446 = vmatpush1.bf16.msra.mxu0 %v585
        %2447 = vmatprep.subr.bf16.mxu0 0
        %2448 = vmatpush1.bf16.msra.mxu0 %v586
        %2449 = vmatprep.subr.bf16.mxu0 0
        %2450 = vmatpush1.bf16.msra.mxu0 %v587
        %2451 = vmatprep.subr.bf16.mxu0 0
        %2452 = vmatpush1.bf16.msra.mxu0 %v588
        %2453 = vmatprep.subr.bf16.mxu0 0
        %2454 = vmatpush1.bf16.msra.mxu0 %v589
        %2455 = vmatprep.subr.bf16.mxu0 0
        %2456 = vmatpush1.bf16.msra.mxu0 %v590
        %2457 = vmatprep.subr.bf16.mxu0 0
        %2458 = vmatpush1.bf16.msra.mxu0 %v591
        %2459 = vmatprep.subr.bf16.mxu0 0
        %2460 = vmatpush1.bf16.msra.mxu0 %v592
        %2461 = vmatprep.subr.bf16.mxu0 0
        %2462 = vmatpush1.bf16.msra.mxu0 %v593
        %2463 = vmatprep.subr.bf16.mxu0 0
        %2464 = vmatpush1.bf16.msra.mxu0 %v594
        %2465 = vmatprep.subr.bf16.mxu0 0
        %2466 = vmatpush1.bf16.msra.mxu0 %v595
        %2467 = vmatprep.subr.bf16.mxu0 0
        %2468 = vmatpush1.bf16.msra.mxu0 %v596
        %2469 = vmatprep.subr.bf16.mxu0 0
        %2470 = vmatpush1.bf16.msra.mxu0 %v597
        %2471 = vmatprep.subr.bf16.mxu0 0
        %2472 = vmatpush1.bf16.msra.mxu0 %v598
        %2473 = vmatprep.subr.bf16.mxu0 0
        %2474 = vmatpush1.bf16.msra.mxu0 %v599
        %2475 = vmatprep.subr.bf16.mxu0 0
        %2476 = vmatpush1.bf16.msra.mxu0 %v600
        %2477 = vmatprep.mubr.bf16.mxu0 %v2438
        %2478 = vmatmul.mubr.bf16.gmra.mrb[0].mxu0 %v2437
        %v2479 = vpop.f32.mrb[0].mxu0
        %v2480 = vadd.f32 0.0, %v2479
        %v2481 = vpop.f32.mrb[0].mxu0
        %v2482 = vpop.f32.mrb[0].mxu0
        %v2483 = vadd.f32 0.0, %v2482
        %v2484 = vpop.f32.mrb[0].mxu0
        %2485 = vmatprep.mubr.bf16.mxu0 %v2440
        %2486 = vmatmul.mubr.bf16.gmra.mrb[0].mxu0 %v2439
        %v2487 = vpop.f32.mrb[0].mxu0
        %v2488 = vadd.f32 0.0, %v2487
        %v2489 = vpop.f32.mrb[0].mxu0
        %v2490 = vpop.f32.mrb[0].mxu0
        %v2491 = vadd.f32 0.0, %v2490
        %v2492 = vpop.f32.mrb[0].mxu0
        %2493 = vmatprep.mubr.bf16.mxu0 %v2442
        %2494 = vmatmul.mubr.bf16.gmra.mrb[0].mxu0 %v2441
        %v2495 = vpop.f32.mrb[0].mxu0
        %v2496 = vadd.f32 0.0, %v2495
        %v2497 = vpop.f32.mrb[0].mxu0
        %v2498 = vpop.f32.mrb[0].mxu0
        %v2499 = vadd.f32 0.0, %v2498
        %v2500 = vpop.f32.mrb[0].mxu0
        %2501 = vmatprep.mubr.bf16.mxu0 %v2444
        %2502 = vmatmul.mubr.bf16.gmra.mrb[0].mxu0 %v2443
        %v2503 = vpop.f32.mrb[0].mxu0
        %v2504 = vadd.f32 0.0, %v2503
        %v2505 = vpop.f32.mrb[0].mxu0
        %v2506 = vpop.f32.mrb[0].mxu0
        %v2507 = vadd.f32 0.0, %v2506
        %v2508 = vpop.f32.mrb[0].mxu0
        %2509 = vdwg.mxu0
        %v2510 = vpack.c.bf16 %v2483, %v2480
        %v2511 = vpack.c.bf16 %v2491, %v2488
        %v2512 = vpack.c.bf16 %v2499, %v2496
        %v2513 = vpack.c.bf16 %v2507, %v2504
        %v2515 = vsel %vm691, %v2510, 0
        %v2518 = vsel %vm691, %v2511, 0
        %v2521 = vsel %vm691, %v2512, 0
        %v2524 = vsel %vm691, %v2513, 0
        %2526 = vmatprep.subr.bf16.mxu0 %v709
        %2527 = vmatpush1.bf16.msra.mxu0 %v706
        %2528 = vmatprep.subr.bf16.mxu0 0
        %2529 = vmatpush1.bf16.msra.mxu0 0
        %2530 = vmatprep.subr.bf16.mxu0 0
        %2531 = vmatpush1.bf16.msra.mxu0 0
        %2532 = vmatprep.subr.bf16.mxu0 0
        %2533 = vmatpush1.bf16.msra.mxu0 0
        %2534 = vmatprep.subr.bf16.mxu0 0
        %2535 = vmatpush1.bf16.msra.mxu0 0
        %2536 = vmatprep.subr.bf16.mxu0 0
        %2537 = vmatpush1.bf16.msra.mxu0 0
        %2538 = vmatprep.subr.bf16.mxu0 0
        %2539 = vmatpush1.bf16.msra.mxu0 0
        %2540 = vmatprep.subr.bf16.mxu0 0
        %2541 = vmatpush1.bf16.msra.mxu0 0
        %2542 = vmatprep.subr.bf16.mxu0 0
        %2543 = vmatpush1.bf16.msra.mxu0 0
        %2544 = vmatprep.subr.bf16.mxu0 0
        %2545 = vmatpush1.bf16.msra.mxu0 0
        %2546 = vmatprep.subr.bf16.mxu0 0
        %2547 = vmatpush1.bf16.msra.mxu0 0
        %2548 = vmatprep.subr.bf16.mxu0 0
        %2549 = vmatpush1.bf16.msra.mxu0 0
        %2550 = vmatprep.subr.bf16.mxu0 0
        %2551 = vmatpush1.bf16.msra.mxu0 0
        %2552 = vmatprep.subr.bf16.mxu0 0
        %2553 = vmatpush1.bf16.msra.mxu0 0
        %2554 = vmatprep.subr.bf16.mxu0 0
        %2555 = vmatpush1.bf16.msra.mxu0 0
        %2556 = vmatprep.subr.bf16.mxu0 0
        %2557 = vmatpush1.bf16.msra.mxu0 0
        %2558 = vmatprep.mubr.bf16.mxu0 0
        %2559 = vmatmul.mubr.bf16.gmra.mrb[0].mxu0 %v2515
        %v2560 = vpop.f32.mrb[0].mxu0
        %v2561 = vadd.f32 0.0, %v2560
        %v2562 = vpop.f32.mrb[0].mxu0
        %v2563 = vadd.f32 0.0, %v2562
        %v2564 = vpop.f32.mrb[0].mxu0
        %v2565 = vadd.f32 0.0, %v2564
        %v2566 = vpop.f32.mrb[0].mxu0
        %v2567 = vadd.f32 0.0, %v2566
        %2568 = vmatprep.mubr.bf16.mxu0 0
        %2569 = vmatmul.mubr.bf16.gmra.mrb[0].mxu0 %v2518
        %v2570 = vpop.f32.mrb[0].mxu0
        %v2571 = vadd.f32 0.0, %v2570
        %v2572 = vpop.f32.mrb[0].mxu0
        %v2573 = vadd.f32 0.0, %v2572
        %v2574 = vpop.f32.mrb[0].mxu0
        %v2575 = vadd.f32 0.0, %v2574
        %v2576 = vpop.f32.mrb[0].mxu0
        %v2577 = vadd.f32 0.0, %v2576
        %2578 = vmatprep.mubr.bf16.mxu0 0
        %2579 = vmatmul.mubr.bf16.gmra.mrb[0].mxu0 %v2521
        %v2580 = vpop.f32.mrb[0].mxu0
        %v2581 = vadd.f32 0.0, %v2580
        %v2582 = vpop.f32.mrb[0].mxu0
        %v2583 = vadd.f32 0.0, %v2582
        %v2584 = vpop.f32.mrb[0].mxu0
        %v2585 = vadd.f32 0.0, %v2584
        %v2586 = vpop.f32.mrb[0].mxu0
        %v2587 = vadd.f32 0.0, %v2586
        %2588 = vmatprep.mubr.bf16.mxu0 0
        %2589 = vmatmul.mubr.bf16.gmra.mrb[0].mxu0 %v2524
        %v2590 = vpop.f32.mrb[0].mxu0
        %v2591 = vadd.f32 0.0, %v2590
        %v2592 = vpop.f32.mrb[0].mxu0
        %v2593 = vadd.f32 0.0, %v2592
        %v2594 = vpop.f32.mrb[0].mxu0
        %v2595 = vadd.f32 0.0, %v2594
        %v2596 = vpop.f32.mrb[0].mxu0
        %v2597 = vadd.f32 0.0, %v2596
        %2598 = vdwg.mxu0
        %v2599 = vsub.f32 %v2399, %v2561
        %v2600 = vsub.f32 %v2401, %v2563
        %v2601 = vsub.f32 %v2403, %v2565
        %v2602 = vsub.f32 %v2405, %v2567
        %v2603 = vsub.f32 %v2409, %v2571
        %v2604 = vsub.f32 %v2411, %v2573
        %v2605 = vsub.f32 %v2413, %v2575
        %v2606 = vsub.f32 %v2415, %v2577
        %v2607 = vsub.f32 %v2419, %v2581
        %v2608 = vsub.f32 %v2421, %v2583
        %v2609 = vsub.f32 %v2423, %v2585
        %v2610 = vsub.f32 %v2425, %v2587
        %v2611 = vsub.f32 %v2429, %v2591
        %v2612 = vsub.f32 %v2431, %v2593
        %v2613 = vsub.f32 %v2433, %v2595
        %v2614 = vsub.f32 %v2435, %v2597
        %v2615 = vmul.f32 %v2599, %v2599
        %v2616 = vmul.f32 %v2600, %v2600
        %v2617 = vmul.f32 %v2601, %v2601
        %v2618 = vmul.f32 %v2602, %v2602
        %v2619 = vmul.f32 %v2603, %v2603
        %v2620 = vmul.f32 %v2604, %v2604
        %v2621 = vmul.f32 %v2605, %v2605
        %v2622 = vmul.f32 %v2606, %v2606
        %v2623 = vmul.f32 %v2607, %v2607
        %v2624 = vmul.f32 %v2608, %v2608
        %v2625 = vmul.f32 %v2609, %v2609
        %v2626 = vmul.f32 %v2610, %v2610
        %v2627 = vmul.f32 %v2611, %v2611
        %v2628 = vmul.f32 %v2612, %v2612
        %v2629 = vmul.f32 %v2613, %v2613
        %v2630 = vmul.f32 %v2614, %v2614
        %v2631 = vpack.c.bf16 %v2617, %v2615
        %v2632 = vpack.c.bf16 %v2618, %v2616
        %v2633 = vpack.c.bf16 %v2621, %v2619
        %v2634 = vpack.c.bf16 %v2622, %v2620
        %v2635 = vpack.c.bf16 %v2625, %v2623
        %v2636 = vpack.c.bf16 %v2626, %v2624
        %v2637 = vpack.c.bf16 %v2629, %v2627
        %v2638 = vpack.c.bf16 %v2630, %v2628
        %2639 = vmatprep.subr.bf16.mxu0 0
        %2640 = vmatpush1.bf16.msra.mxu0 %v585
        %2641 = vmatprep.subr.bf16.mxu0 0
        %2642 = vmatpush1.bf16.msra.mxu0 %v586
        %2643 = vmatprep.subr.bf16.mxu0 0
        %2644 = vmatpush1.bf16.msra.mxu0 %v587
        %2645 = vmatprep.subr.bf16.mxu0 0
        %2646 = vmatpush1.bf16.msra.mxu0 %v588
        %2647 = vmatprep.subr.bf16.mxu0 0
        %2648 = vmatpush1.bf16.msra.mxu0 %v589
        %2649 = vmatprep.subr.bf16.mxu0 0
        %2650 = vmatpush1.bf16.msra.mxu0 %v590
        %2651 = vmatprep.subr.bf16.mxu0 0
        %2652 = vmatpush1.bf16.msra.mxu0 %v591
        %2653 = vmatprep.subr.bf16.mxu0 0
        %2654 = vmatpush1.bf16.msra.mxu0 %v592
        %2655 = vmatprep.subr.bf16.mxu0 0
        %2656 = vmatpush1.bf16.msra.mxu0 %v593
        %2657 = vmatprep.subr.bf16.mxu0 0
        %2658 = vmatpush1.bf16.msra.mxu0 %v594
        %2659 = vmatprep.subr.bf16.mxu0 0
        %2660 = vmatpush1.bf16.msra.mxu0 %v595
        %2661 = vmatprep.subr.bf16.mxu0 0
        %2662 = vmatpush1.bf16.msra.mxu0 %v596
        %2663 = vmatprep.subr.bf16.mxu0 0
        %2664 = vmatpush1.bf16.msra.mxu0 %v597
        %2665 = vmatprep.subr.bf16.mxu0 0
        %2666 = vmatpush1.bf16.msra.mxu0 %v598
        %2667 = vmatprep.subr.bf16.mxu0 0
        %2668 = vmatpush1.bf16.msra.mxu0 %v599
        %2669 = vmatprep.subr.bf16.mxu0 0
        %2670 = vmatpush1.bf16.msra.mxu0 %v600
        %2671 = vmatprep.mubr.bf16.mxu0 %v2632
        %2672 = vmatmul.mubr.bf16.gmra.mrb[0].mxu0 %v2631
        %v2673 = vpop.f32.mrb[0].mxu0
        %v2674 = vadd.f32 1e-05, %v2673
        %v2675 = vpop.f32.mrb[0].mxu0
        %v2676 = vpop.f32.mrb[0].mxu0
        %v2677 = vadd.f32 1e-05, %v2676
        %v2678 = vpop.f32.mrb[0].mxu0
        %2679 = vmatprep.mubr.bf16.mxu0 %v2634
        %2680 = vmatmul.mubr.bf16.gmra.mrb[0].mxu0 %v2633
        %v2681 = vpop.f32.mrb[0].mxu0
        %v2682 = vadd.f32 1e-05, %v2681
        %v2683 = vpop.f32.mrb[0].mxu0
        %v2684 = vpop.f32.mrb[0].mxu0
        %v2685 = vadd.f32 1e-05, %v2684
        %v2686 = vpop.f32.mrb[0].mxu0
        %2687 = vmatprep.mubr.bf16.mxu0 %v2636
        %2688 = vmatmul.mubr.bf16.gmra.mrb[0].mxu0 %v2635
        %v2689 = vpop.f32.mrb[0].mxu0
        %v2690 = vadd.f32 1e-05, %v2689
        %v2691 = vpop.f32.mrb[0].mxu0
        %v2692 = vpop.f32.mrb[0].mxu0
        %v2693 = vadd.f32 1e-05, %v2692
        %v2694 = vpop.f32.mrb[0].mxu0
        %2695 = vmatprep.mubr.bf16.mxu0 %v2638
        %2696 = vmatmul.mubr.bf16.gmra.mrb[0].mxu0 %v2637
        %v2697 = vpop.f32.mrb[0].mxu0
        %v2698 = vadd.f32 1e-05, %v2697
        %v2699 = vpop.f32.mrb[0].mxu0
        %v2700 = vpop.f32.mrb[0].mxu0
        %v2701 = vadd.f32 1e-05, %v2700
        %v2702 = vpop.f32.mrb[0].mxu0
        %2703 = vdwg.mxu0
        %v2704 = vrsqrt.pop %v2674
        %v2705 = vrsqrt.pop %v2677
        %v2706 = vrsqrt.pop %v2682
        %v2707 = vrsqrt.pop %v2685
        %v2708 = vrsqrt.pop %v2690
        %v2709 = vrsqrt.pop %v2693
        %v2710 = vrsqrt.pop %v2698
        %v2711 = vrsqrt.pop %v2701
        %v2712 = vpack.c.bf16 %v2705, %v2704
        %v2713 = vpack.c.bf16 %v2707, %v2706
        %v2714 = vpack.c.bf16 %v2709, %v2708
        %v2715 = vpack.c.bf16 %v2711, %v2710
        %v2717 = vsel %vm691, %v2712, 0
        %v2720 = vsel %vm691, %v2713, 0
        %v2723 = vsel %vm691, %v2714, 0
        %v2726 = vsel %vm691, %v2715, 0
        %2728 = vmatprep.subr.bf16.mxu0 %v709
        %2729 = vmatpush1.bf16.msra.mxu0 %v706
        %2730 = vmatprep.subr.bf16.mxu0 0
        %2731 = vmatpush1.bf16.msra.mxu0 0
        %2732 = vmatprep.subr.bf16.mxu0 0
        %2733 = vmatpush1.bf16.msra.mxu0 0
        %2734 = vmatprep.subr.bf16.mxu0 0
        %2735 = vmatpush1.bf16.msra.mxu0 0
        %2736 = vmatprep.subr.bf16.mxu0 0
        %2737 = vmatpush1.bf16.msra.mxu0 0
        %2738 = vmatprep.subr.bf16.mxu0 0
        %2739 = vmatpush1.bf16.msra.mxu0 0
        %2740 = vmatprep.subr.bf16.mxu0 0
        %2741 = vmatpush1.bf16.msra.mxu0 0
        %2742 = vmatprep.subr.bf16.mxu0 0
        %2743 = vmatpush1.bf16.msra.mxu0 0
        %2744 = vmatprep.subr.bf16.mxu0 0
        %2745 = vmatpush1.bf16.msra.mxu0 0
        %2746 = vmatprep.subr.bf16.mxu0 0
        %2747 = vmatpush1.bf16.msra.mxu0 0
        %2748 = vmatprep.subr.bf16.mxu0 0
        %2749 = vmatpush1.bf16.msra.mxu0 0
        %2750 = vmatprep.subr.bf16.mxu0 0
        %2751 = vmatpush1.bf16.msra.mxu0 0
        %2752 = vmatprep.subr.bf16.mxu0 0
        %2753 = vmatpush1.bf16.msra.mxu0 0
        %2754 = vmatprep.subr.bf16.mxu0 0
        %2755 = vmatpush1.bf16.msra.mxu0 0
        %2756 = vmatprep.subr.bf16.mxu0 0
        %2757 = vmatpush1.bf16.msra.mxu0 0
        %2758 = vmatprep.subr.bf16.mxu0 0
        %2759 = vmatpush1.bf16.msra.mxu0 0
        %2760 = vmatprep.mubr.bf16.mxu0 0
        %2761 = vmatmul.mubr.bf16.gmra.mrb[0].mxu0 %v2717
        %v2762 = vpop.f32.mrb[0].mxu0
        %v2763 = vadd.f32 0.0, %v2762
        %v2764 = vpop.f32.mrb[0].mxu0
        %v2765 = vadd.f32 0.0, %v2764
        %v2766 = vpop.f32.mrb[0].mxu0
        %v2767 = vadd.f32 0.0, %v2766
        %v2768 = vpop.f32.mrb[0].mxu0
        %v2769 = vadd.f32 0.0, %v2768
        %2770 = vmatprep.mubr.bf16.mxu0 0
        %2771 = vmatmul.mubr.bf16.gmra.mrb[0].mxu0 %v2720
        %v2772 = vpop.f32.mrb[0].mxu0
        %v2773 = vadd.f32 0.0, %v2772
        %v2774 = vpop.f32.mrb[0].mxu0
        %v2775 = vadd.f32 0.0, %v2774
        %v2776 = vpop.f32.mrb[0].mxu0
        %v2777 = vadd.f32 0.0, %v2776
        %v2778 = vpop.f32.mrb[0].mxu0
        %v2779 = vadd.f32 0.0, %v2778
        %2780 = vmatprep.mubr.bf16.mxu0 0
        %2781 = vmatmul.mubr.bf16.gmra.mrb[0].mxu0 %v2723
        %v2782 = vpop.f32.mrb[0].mxu0
        %v2783 = vadd.f32 0.0, %v2782
        %v2784 = vpop.f32.mrb[0].mxu0
        %v2785 = vadd.f32 0.0, %v2784
        %v2786 = vpop.f32.mrb[0].mxu0
        %v2787 = vadd.f32 0.0, %v2786
        %v2788 = vpop.f32.mrb[0].mxu0
        %v2789 = vadd.f32 0.0, %v2788
        %2790 = vmatprep.mubr.bf16.mxu0 0
        %2791 = vmatmul.mubr.bf16.gmra.mrb[0].mxu0 %v2726
        %v2792 = vpop.f32.mrb[0].mxu0
        %v2793 = vadd.f32 0.0, %v2792
        %v2794 = vpop.f32.mrb[0].mxu0
        %v2795 = vadd.f32 0.0, %v2794
        %v2796 = vpop.f32.mrb[0].mxu0
        %v2797 = vadd.f32 0.0, %v2796
        %v2798 = vpop.f32.mrb[0].mxu0
        %v2799 = vadd.f32 0.0, %v2798
        %2800 = vdwg.mxu0
        %v2801 = vmul.f32 %v2599, %v2763
        %v2802 = vmul.f32 %v2600, %v2765
        %v2803 = vmul.f32 %v2601, %v2767
        %v2804 = vmul.f32 %v2602, %v2769
        %v2805 = vmul.f32 %v2603, %v2773
        %v2806 = vmul.f32 %v2604, %v2775
        %v2807 = vmul.f32 %v2605, %v2777
        %v2808 = vmul.f32 %v2606, %v2779
        %v2809 = vmul.f32 %v2607, %v2783
        %v2810 = vmul.f32 %v2608, %v2785
        %v2811 = vmul.f32 %v2609, %v2787
        %v2812 = vmul.f32 %v2610, %v2789
        %v2813 = vmul.f32 %v2611, %v2793
        %v2814 = vmul.f32 %v2612, %v2795
        %v2815 = vmul.f32 %v2613, %v2797
        %v2816 = vmul.f32 %v2614, %v2799
        %v2817 = vmul.f32 %v2801, %v1006
        %v2818 = vmul.f32 %v2802, %v1010
        %v2819 = vmul.f32 %v2803, %v1006
        %v2820 = vmul.f32 %v2804, %v1010
        %v2821 = vmul.f32 %v2805, %v1006
        %v2822 = vmul.f32 %v2806, %v1010
        %v2823 = vmul.f32 %v2807, %v1006
        %v2824 = vmul.f32 %v2808, %v1010
        %v2825 = vmul.f32 %v2809, %v1006
        %v2826 = vmul.f32 %v2810, %v1010
        %v2827 = vmul.f32 %v2811, %v1006
        %v2828 = vmul.f32 %v2812, %v1010
        %v2829 = vmul.f32 %v2813, %v1006
        %v2830 = vmul.f32 %v2814, %v1010
        %v2831 = vmul.f32 %v2815, %v1006
        %v2832 = vmul.f32 %v2816, %v1010
        %v2833 = vadd.f32 %v2817, %v1033
        %v2834 = vadd.f32 %v2818, %v1037
        %v2835 = vadd.f32 %v2819, %v1033
        %v2836 = vadd.f32 %v2820, %v1037
        %v2837 = vadd.f32 %v2821, %v1033
        %v2838 = vadd.f32 %v2822, %v1037
        %v2839 = vadd.f32 %v2823, %v1033
        %v2840 = vadd.f32 %v2824, %v1037
        %v2841 = vadd.f32 %v2825, %v1033
        %v2842 = vadd.f32 %v2826, %v1037
        %v2843 = vadd.f32 %v2827, %v1033
        %v2844 = vadd.f32 %v2828, %v1037
        %v2845 = vadd.f32 %v2829, %v1033
        %v2846 = vadd.f32 %v2830, %v1037
        %v2847 = vadd.f32 %v2831, %v1033
        %v2848 = vadd.f32 %v2832, %v1037
        %s2849 = scalar_lea.vmem %s284, 48 [#allocation5]
        %2850 = vst [vmem:[%s2849] sm:$0xff] %v2833
        %2851 = vst [vmem:[%s2849 + $0x8] sm:$0xff] %v2834
        %2852 = vst [vmem:[%s2849 + $0x40] sm:$0xff] %v2835
        %2853 = vst [vmem:[%s2849 + $0x48] sm:$0xff] %v2836
        %2854 = vst [vmem:[%s2849 + $0x80] sm:$0xff] %v2837
        %2855 = vst [vmem:[%s2849 + $0x88] sm:$0xff] %v2838
        %2856 = vst [vmem:[%s2849 + $0xc0] sm:$0xff] %v2839
        %2857 = vst [vmem:[%s2849 + $0xc8] sm:$0xff] %v2840
        %2858 = vst [vmem:[%s2849 + $0x100] sm:$0xff] %v2841
        %2859 = vst [vmem:[%s2849 + $0x108] sm:$0xff] %v2842
        %2860 = vst [vmem:[%s2849 + $0x140] sm:$0xff] %v2843
        %2861 = vst [vmem:[%s2849 + $0x148] sm:$0xff] %v2844
        %2862 = vst [vmem:[%s2849 + $0x180] sm:$0xff] %v2845
        %2863 = vst [vmem:[%s2849 + $0x188] sm:$0xff] %v2846
        %2864 = vst [vmem:[%s2849 + $0x1c0] sm:$0xff] %v2847
        %2865 = vst [vmem:[%s2849 + $0x1c8] sm:$0xff] %v2848
        %s2866 = sand.u32 %s176, 1
        %s2867 = scalar_lea.sflag [#allocation4], %s2866
        %s2868 = sand.u32 %s176, 1
        %s2869 = smul.addr %s2868, 512
        %s2870 = scalar_lea.vmem [#allocation5], %s2869
        // Predicated region
        $region49: #{tpu_custom_call.1} parent=43 // pred_check
          %p2871 = pneg %p186
        $region50: #{tpu_custom_call.1} parent=43 // pred_check_branch
          %2873 = sbr.rel (%p2871) target = $region52
        $region51: #{tpu_custom_call.1} parent=43 // pred_region
          %s2874 = smul.u32 8, %s26
          %s2876 = ssub.s32 8192, 8192
          %2877 = vsyncadd %s2867, %s2876
          %s2878 = smul.addr %s2874, 8
          %s2879 = smul.addr %s25, 64
          %s2880 = sadd.s32 %s2878, %s2879
          %s2881 = smul.addr %s2880, 128
          %s2882 = scalar_lea.hbm %s6, %s2881
          %s2883 = sshll.u32 %s2870, 4
          %s2884 = int_to_ptr.vmem [resolvable:$true] %s2883
          %2889 = dma.vmem_to_hbm [thread:$0]  %s2884, 8192, %s2882, %s2867, 256, 256, 16
        $region52: #{tpu_custom_call.1} parent=43 // pred_fallthru
          _
      $region44: #{tpu_custom_call.1} parent=5 // pred_fallthru
        _
      %p2890 = scmp.le.s32.totalorder 2, %s16
      // Predicated region
      $region53: #{tpu_custom_call.1} parent=5 // pred_check
        %p2891 = pneg %p2890
      $region54: #{tpu_custom_call.1} parent=5 // pred_check_branch
        %2893 = sbr.rel (%p2891) target = $region56
      $region55: #{tpu_custom_call.1} parent=5 // pred_region
        %s2894 = ssub.s32 %s16, 2
        // Predicated region
        $region57: #{tpu_custom_call.1} parent=55 // pred_check
          %p2895 = pneg %p192
        $region58: #{tpu_custom_call.1} parent=55 // pred_check_branch
          %2897 = sbr.rel (%p2895) target = $region60
        $region59: #{tpu_custom_call.1} parent=55 // pred_region
          %s2898 = sand.u32 %s177, 1
          %s2899 = scalar_lea.sflag [#allocation4], %s2898
          %s2900 = sand.u32 %s177, 1
          %s2901 = smul.addr %s2900, 512
          %s2902 = scalar_lea.vmem [#allocation5], %s2901
          %2903 = dma.done %s2899, 8192
        $region60: #{tpu_custom_call.1} parent=55 // pred_fallthru
          _
      $region56: #{tpu_custom_call.1} parent=5 // pred_fallthru
        _
    $region6: #{tpu_custom_call.1} parent=1 // loop_footer
      %s20 = sadd.s32 1, %s16
    $region7: #{tpu_custom_call.1} parent=1 // loop_footer_branch
      %15 = sbr.rel target = $region3
    $region8: #{tpu_custom_call.1} parent=1 // loop_exit
      _
    %2904 = vsyncpa [#allocation3], 1
    %s2905 = scalar_lea.sflag [#allocation3], 1
    %2906 = vsyncpa %s2905, 1
    %2907 = vsyncpa [#allocation4], 1
    %s2908 = scalar_lea.sflag [#allocation4], 1
    %2909 = vsyncpa %s2908, 1

</llo_original>
